<compile_context>
chip_gen: v7x
topology: tpu7x:2x2x1
jax: 0.10.0
libtpu: 0.0.40
codegen_flags: <defaults>
</compile_context>

<pallas_src>
import jax
import jax.numpy as jnp
from jax.experimental import pallas as pl
from jax.experimental.pallas import tpu as pltpu

_H = 128  # padded hidden / output width (lane-dense)


def _round_up(x, m):
    return (x + m - 1) // m * m


def _dnn_kernel(x_ref, w1_ref, b1_ref, wh_ref, bh_ref, wo_ref, bo_ref, o_ref):
    """Fused 6-layer MLP forward for one batch tile. Everything lives in VMEM."""
    # Cast x to the MXU operand dtype in-kernel (VPU slack); accumulate in f32.
    x = x_ref[...].astype(jnp.bfloat16)
    h = jnp.dot(x, w1_ref[...], preferred_element_type=jnp.float32) + b1_ref[...]
    h = jnp.maximum(h, 0.0)
    # TODO(synk): Dropout(0.2) is identity here (eval mode).

    # Hidden layers 2..5: stacked (n_hidden, 128, 128) weights, statically unrolled.
    for l in range(wh_ref.shape[0]):
        y = jnp.dot(h.astype(jnp.bfloat16), wh_ref[l],
                    preferred_element_type=jnp.float32) + bh_ref[l]
        h = jnp.maximum(y, 0.0)

    # Output layer (padded to 128 lanes -> full-lane unmasked bf16 store).
    out = jnp.dot(h.astype(jnp.bfloat16), wo_ref[...],
                  preferred_element_type=jnp.float32) + bo_ref[...]
    o_ref[...] = out.astype(o_ref.dtype)


def init_params(key, num_features, hidden=100, num_classes=10):
    """f32, unpadded params mimicking nn.Linear's U(-1/sqrt(fan_in), 1/sqrt(fan_in)).

    Weights stored as (in, out) — transpose of PyTorch's (out, in). Biases as (1, out).
    """
    dims = [num_features] + [hidden] * 5 + [num_classes]
    params = []
    for i in range(6):
        fan_in, fan_out = dims[i], dims[i + 1]
        key, kw, kb = jax.random.split(key, 3)
        bound = 1.0 / jnp.sqrt(jnp.float32(fan_in))
        w = jax.random.uniform(kw, (fan_in, fan_out), jnp.float32, -bound, bound)
        b = jax.random.uniform(kb, (1, fan_out), jnp.float32, -bound, bound)
        params.append((w, b))
    return params


def pack_params(params, num_features):
    """Zero-pad to lane-dense shapes, cast weights to bf16, stack hidden layers."""
    (w1, b1), *hidden, (wo, bo) = params
    f_pad = _round_up(num_features, 128)

    w1p = jnp.zeros((f_pad, _H), jnp.float32).at[:w1.shape[0], :w1.shape[1]].set(w1)
    b1p = jnp.zeros((1, _H), jnp.float32).at[:, :b1.shape[1]].set(b1)

    whp = jnp.zeros((len(hidden), _H, _H), jnp.float32)
    bhp = jnp.zeros((len(hidden), 1, _H), jnp.float32)
    for l, (w, b) in enumerate(hidden):
        whp = whp.at[l, :w.shape[0], :w.shape[1]].set(w)
        bhp = bhp.at[l, :, :b.shape[1]].set(b)

    wop = jnp.zeros((_H, _H), jnp.float32).at[:wo.shape[0], :wo.shape[1]].set(wo)
    bop = jnp.zeros((1, _H), jnp.float32).at[:, :bo.shape[1]].set(bo)

    return dict(w1=w1p.astype(jnp.bfloat16), b1=b1p,
                wh=whp.astype(jnp.bfloat16), bh=bhp,
                wo=wop.astype(jnp.bfloat16), bo=bop)


def _pick_batch_tile(B, f_pad, itemsize):
    """Large tiles (per-step overhead amortization); even grids for v7x's 2 TCs."""
    # Cap so a double-buffered x tile stays <= ~40 MiB (fits v7x's 64 MiB VMEM/TC).
    cap = max(8, ((40 * 2 ** 20) // (2 * f_pad * itemsize)) // 8 * 8)
    if B <= 1024 and B <= cap:
        return B  # single tile, grid=(1,): no batch padding, no per-step overhead
    best = None
    for t in (1024, 896, 768, 640, 512, 384, 256, 128):
        if t <= cap and B % t == 0:
            if (B // t) % 2 == 0:      # even grid -> clean 2-way TC sharding on v7x
                return t
            if best is None:
                best = t
    if best is not None:
        return best
    return max(8, min(1024, cap))


def _run_pallas(xp, packed, batch_tile, grid, single_buffer_weights,
                vmem_limit, flops, bytes_accessed):
    f_pad = packed["w1"].shape[0]
    n_hidden = packed["wh"].shape[0]
    B_pad = xp.shape[0]

    def wspec(shape, index_map):
        # Grid-invariant operands: a single VMEM buffer is enough.
        if single_buffer_weights:
            return pl.BlockSpec(shape, index_map, pipeline_mode=pl.Buffered(1))
        return pl.BlockSpec(shape, index_map)

    return pl.pallas_call(
        _dnn_kernel,
        out_shape=jax.ShapeDtypeStruct((B_pad, _H), jnp.bfloat16),
        grid_spec=pltpu.PrefetchScalarGridSpec(
            num_scalar_prefetch=0,
            grid=grid,
            in_specs=[
                pl.BlockSpec((batch_tile, f_pad), lambda i: (i, 0)),     # x tile (native dtype)
                wspec((f_pad, _H), lambda i: (0, 0)),                    # w1 (resident)
                wspec((1, _H), lambda i: (0, 0)),                        # b1
                wspec((n_hidden, _H, _H), lambda i: (0, 0, 0)),          # stacked hidden W
                wspec((n_hidden, 1, _H), lambda i: (0, 0, 0)),           # stacked hidden b
                wspec((_H, _H), lambda i: (0, 0)),                       # w_out
                wspec((1, _H), lambda i: (0, 0)),                        # b_out
            ],
            out_specs=pl.BlockSpec((batch_tile, _H), lambda i: (i, 0)),  # bf16, lane-dense
        ),
        compiler_params=pltpu.CompilerParams(
            dimension_semantics=("parallel",),
            vmem_limit_bytes=vmem_limit,
        ),
        cost_estimate=pl.CostEstimate(
            flops=int(flops), transcendentals=0, bytes_accessed=int(bytes_accessed)),
    )(xp, packed["w1"], packed["b1"], packed["wh"], packed["bh"],
      packed["wo"], packed["bo"])


def dnn_forward(x, packed, *, batch_tile=None, num_classes=10):
    """x: (B, num_features). packed: output of pack_params(). Returns (B, num_classes) f32."""
    B, F = x.shape
    f_pad = packed["w1"].shape[0]
    n_hidden = packed["wh"].shape[0]
    assert F <= f_pad

    # Pad the feature dim only when F isn't lane-aligned (padded w1 rows are zero,
    # so zero-padding x is exact). No dtype conversion in the wrapper.
    xp = x if F == f_pad else jnp.pad(x, ((0, 0), (0, f_pad - F)))
    itemsize = xp.dtype.itemsize

    if batch_tile is None:
        batch_tile = _pick_batch_tile(B, f_pad, itemsize)

    if batch_tile >= B:
        batch_tile = B            # single tile; block == full array (no sublane constraint)
        B_pad = B
    else:
        assert batch_tile % 8 == 0, "batch_tile must be a multiple of 8 (sublane)"
        B_pad = _round_up(B, batch_tile)
        if B_pad != B:
            xp = jnp.pad(xp, ((0, B_pad - B), (0, 0)))
    grid = (B_pad // batch_tile,)

    # Cost estimate for XLA's scheduler.
    w_bytes = (packed["w1"].size + packed["wh"].size + packed["wo"].size) * 2   # bf16
    b_bytes = (packed["b1"].size + packed["bh"].size + packed["bo"].size) * 4   # f32
    flops = 2 * B_pad * (f_pad * _H + (n_hidden + 1) * _H * _H)
    bytes_accessed = xp.size * itemsize + w_bytes + b_bytes + B_pad * _H * 2

    # VMEM budget: double-buffered x tile + bf16 out tile + weights (<=2 copies) + temps.
    est = (2 * batch_tile * f_pad * itemsize     # x tile (<=2 buffers)
           + 2 * batch_tile * _H * 2             # out tile (bf16, <=2 buffers)
           + 2 * (w_bytes + b_bytes)             # weights/biases (conservatively x2)
           + 6 * batch_tile * _H * 4             # f32 activation temporaries
           + (2 << 20))                          # slack
    vmem_limit = int(min(56 * 2 ** 20, max(32 * 2 ** 20, est)))  # fits v7x's 64 MiB/TC

    try:
        out = _run_pallas(xp, packed, batch_tile, grid, True,
                          vmem_limit, flops, bytes_accessed)
    except Exception:
        # Fallback if pipeline_mode=pl.Buffered(1) is not supported by this JAX version.
        out = _run_pallas(xp, packed, batch_tile, grid, False,
                          vmem_limit, flops, bytes_accessed)

    return out[:B, :num_classes].astype(jnp.float32)


def dnn_reference(x, params):
    """Pure-JAX reference mimicking the kernel's precision (bf16 MXU operands, f32 accum)."""
    h = x
    for i, (w, b) in enumerate(params):
        h = jnp.dot(h.astype(jnp.bfloat16), w.astype(jnp.bfloat16),
                    preferred_element_type=jnp.float32) + b
        if i < 5:
            h = jnp.maximum(h, 0.0)
    return h


if __name__ == "__main__":
    key = jax.random.PRNGKey(0)
    kx, kp = jax.random.split(key)

    batch = 64
    num_features = 256   # small stand-in for flattened CIFAR-10 features (3*32*32 = 3072)

    x = jax.random.normal(kx, (batch, num_features), jnp.float32)
    params = init_params(kp, num_features)
    packed = pack_params(params, num_features)

    out = dnn_forward(x, packed)           # single-tile grid=(1,) path for small batch
    out = jax.block_until_ready(out)

    ref = dnn_reference(x, params)
    assert out.shape == (batch, 10), out.shape
    # Tolerance accounts for the bf16 output writeback (kernel) vs f32 final (reference).
    assert jnp.allclose(out, ref, atol=1e-2, rtol=1e-2), \
        f"mismatch vs JAX reference: max abs err {float(jnp.max(jnp.abs(out - ref)))}"

    print("KERNEL_OK")
</pallas_src>

<mosaic_0001>
module attributes {stable_mosaic.version = 11 : i64} {
  func.func @_dnn_kernel(%arg0: i32, %arg1: memref<64x256xf32, #tpu.memory_space<vmem>>, %arg2: memref<256x128xbf16, #tpu.memory_space<vmem>>, %arg3: memref<1x128xf32, #tpu.memory_space<vmem>>, %arg4: memref<4x128x128xbf16, #tpu.memory_space<vmem>>, %arg5: memref<4x1x128xf32, #tpu.memory_space<vmem>>, %arg6: memref<128x128xbf16, #tpu.memory_space<vmem>>, %arg7: memref<1x128xf32, #tpu.memory_space<vmem>>, %arg8: memref<64x128xbf16, #tpu.memory_space<vmem>>) attributes {dimension_semantics = [#tpu.dimension_semantics<parallel>], iteration_bounds = array<i64: 1>, scalar_prefetch = 0 : i64, scratch_operands = 0 : i64, tpu.core_type = #tpu.core_type<tc>, window_params = [{transform_indices = @transform_0, window_bounds = array<i64: 64, 256>}, {pipeline_mode = #tpu.pipeline_mode<synchronous>, transform_indices = @transform_1, window_bounds = array<i64: 256, 128>}, {pipeline_mode = #tpu.pipeline_mode<synchronous>, transform_indices = @transform_2, window_bounds = array<i64: 1, 128>}, {pipeline_mode = #tpu.pipeline_mode<synchronous>, transform_indices = @transform_3, window_bounds = array<i64: 4, 128, 128>}, {pipeline_mode = #tpu.pipeline_mode<synchronous>, transform_indices = @transform_4, window_bounds = array<i64: 4, 1, 128>}, {pipeline_mode = #tpu.pipeline_mode<synchronous>, transform_indices = @transform_5, window_bounds = array<i64: 128, 128>}, {pipeline_mode = #tpu.pipeline_mode<synchronous>, transform_indices = @transform_6, window_bounds = array<i64: 1, 128>}, {transform_indices = @transform_7, window_bounds = array<i64: 64, 128>}]} {
    %c0 = arith.constant 0 : index
    %c0_0 = arith.constant 0 : index
    %0 = vector.load %arg1[%c0, %c0_0] : memref<64x256xf32, #tpu.memory_space<vmem>>, vector<64x256xf32>
    %1 = arith.truncf %0 : vector<64x256xf32> to vector<64x256xbf16>
    %c0_1 = arith.constant 0 : index
    %c0_2 = arith.constant 0 : index
    %2 = vector.load %arg2[%c0_1, %c0_2] : memref<256x128xbf16, #tpu.memory_space<vmem>>, vector<256x128xbf16>
    %cst = arith.constant dense<0.000000e+00> : vector<64x128xf32>
    %3 = tpu.matmul %1, %2, %cst {dimension_numbers = #tpu.dot_dimension_numbers<[1], [0], [0], [1], [0, 0, 1, 1], [], []>} : vector<64x256xbf16>, vector<256x128xbf16>, vector<64x128xf32> -> vector<64x128xf32>
    %c0_3 = arith.constant 0 : index
    %c0_4 = arith.constant 0 : index
    %4 = vector.load %arg3[%c0_3, %c0_4] : memref<1x128xf32, #tpu.memory_space<vmem>>, vector<1x128xf32>
    %5 = vector.broadcast %4 : vector<1x128xf32> to vector<64x128xf32>
    %6 = arith.addf %3, %5 : vector<64x128xf32>
    %cst_5 = arith.constant 0.000000e+00 : f32
    %7 = vector.broadcast %cst_5 : f32 to vector<64x128xf32>
    %8 = arith.maximumf %6, %7 : vector<64x128xf32>
    %9 = arith.truncf %8 : vector<64x128xf32> to vector<64x128xbf16>
    %c0_6 = arith.constant 0 : index
    %c0_7 = arith.constant 0 : index
    %c0_8 = arith.constant 0 : index
    %10 = vector.load %arg4[%c0_6, %c0_7, %c0_8] : memref<4x128x128xbf16, #tpu.memory_space<vmem>>, vector<1x128x128xbf16>
    %11 = vector.shape_cast %10 : vector<1x128x128xbf16> to vector<128x128xbf16>
    %cst_9 = arith.constant dense<0.000000e+00> : vector<64x128xf32>
    %12 = tpu.matmul %9, %11, %cst_9 {dimension_numbers = #tpu.dot_dimension_numbers<[1], [0], [0], [1], [0, 0, 1, 1], [], []>} : vector<64x128xbf16>, vector<128x128xbf16>, vector<64x128xf32> -> vector<64x128xf32>
    %c0_10 = arith.constant 0 : index
    %c0_11 = arith.constant 0 : index
    %c0_12 = arith.constant 0 : index
    %13 = vector.load %arg5[%c0_10, %c0_11, %c0_12] : memref<4x1x128xf32, #tpu.memory_space<vmem>>, vector<1x1x128xf32>
    %14 = vector.shape_cast %13 : vector<1x1x128xf32> to vector<1x128xf32>
    %15 = vector.broadcast %14 : vector<1x128xf32> to vector<64x128xf32>
    %16 = arith.addf %12, %15 : vector<64x128xf32>
    %cst_13 = arith.constant 0.000000e+00 : f32
    %17 = vector.broadcast %cst_13 : f32 to vector<64x128xf32>
    %18 = arith.maximumf %16, %17 : vector<64x128xf32>
    %19 = arith.truncf %18 : vector<64x128xf32> to vector<64x128xbf16>
    %c1 = arith.constant 1 : index
    %c0_14 = arith.constant 0 : index
    %c0_15 = arith.constant 0 : index
    %20 = vector.load %arg4[%c1, %c0_14, %c0_15] : memref<4x128x128xbf16, #tpu.memory_space<vmem>>, vector<1x128x128xbf16>
    %21 = vector.shape_cast %20 : vector<1x128x128xbf16> to vector<128x128xbf16>
    %cst_16 = arith.constant dense<0.000000e+00> : vector<64x128xf32>
    %22 = tpu.matmul %19, %21, %cst_16 {dimension_numbers = #tpu.dot_dimension_numbers<[1], [0], [0], [1], [0, 0, 1, 1], [], []>} : vector<64x128xbf16>, vector<128x128xbf16>, vector<64x128xf32> -> vector<64x128xf32>
    %c1_17 = arith.constant 1 : index
    %c0_18 = arith.constant 0 : index
    %c0_19 = arith.constant 0 : index
    %23 = vector.load %arg5[%c1_17, %c0_18, %c0_19] : memref<4x1x128xf32, #tpu.memory_space<vmem>>, vector<1x1x128xf32>
    %24 = vector.shape_cast %23 : vector<1x1x128xf32> to vector<1x128xf32>
    %25 = vector.broadcast %24 : vector<1x128xf32> to vector<64x128xf32>
    %26 = arith.addf %22, %25 : vector<64x128xf32>
    %cst_20 = arith.constant 0.000000e+00 : f32
    %27 = vector.broadcast %cst_20 : f32 to vector<64x128xf32>
    %28 = arith.maximumf %26, %27 : vector<64x128xf32>
    %29 = arith.truncf %28 : vector<64x128xf32> to vector<64x128xbf16>
    %c2 = arith.constant 2 : index
    %c0_21 = arith.constant 0 : index
    %c0_22 = arith.constant 0 : index
    %30 = vector.load %arg4[%c2, %c0_21, %c0_22] : memref<4x128x128xbf16, #tpu.memory_space<vmem>>, vector<1x128x128xbf16>
    %31 = vector.shape_cast %30 : vector<1x128x128xbf16> to vector<128x128xbf16>
    %cst_23 = arith.constant dense<0.000000e+00> : vector<64x128xf32>
    %32 = tpu.matmul %29, %31, %cst_23 {dimension_numbers = #tpu.dot_dimension_numbers<[1], [0], [0], [1], [0, 0, 1, 1], [], []>} : vector<64x128xbf16>, vector<128x128xbf16>, vector<64x128xf32> -> vector<64x128xf32>
    %c2_24 = arith.constant 2 : index
    %c0_25 = arith.constant 0 : index
    %c0_26 = arith.constant 0 : index
    %33 = vector.load %arg5[%c2_24, %c0_25, %c0_26] : memref<4x1x128xf32, #tpu.memory_space<vmem>>, vector<1x1x128xf32>
    %34 = vector.shape_cast %33 : vector<1x1x128xf32> to vector<1x128xf32>
    %35 = vector.broadcast %34 : vector<1x128xf32> to vector<64x128xf32>
    %36 = arith.addf %32, %35 : vector<64x128xf32>
    %cst_27 = arith.constant 0.000000e+00 : f32
    %37 = vector.broadcast %cst_27 : f32 to vector<64x128xf32>
    %38 = arith.maximumf %36, %37 : vector<64x128xf32>
    %39 = arith.truncf %38 : vector<64x128xf32> to vector<64x128xbf16>
    %c3 = arith.constant 3 : index
    %c0_28 = arith.constant 0 : index
    %c0_29 = arith.constant 0 : index
    %40 = vector.load %arg4[%c3, %c0_28, %c0_29] : memref<4x128x128xbf16, #tpu.memory_space<vmem>>, vector<1x128x128xbf16>
    %41 = vector.shape_cast %40 : vector<1x128x128xbf16> to vector<128x128xbf16>
    %cst_30 = arith.constant dense<0.000000e+00> : vector<64x128xf32>
    %42 = tpu.matmul %39, %41, %cst_30 {dimension_numbers = #tpu.dot_dimension_numbers<[1], [0], [0], [1], [0, 0, 1, 1], [], []>} : vector<64x128xbf16>, vector<128x128xbf16>, vector<64x128xf32> -> vector<64x128xf32>
    %c3_31 = arith.constant 3 : index
    %c0_32 = arith.constant 0 : index
    %c0_33 = arith.constant 0 : index
    %43 = vector.load %arg5[%c3_31, %c0_32, %c0_33] : memref<4x1x128xf32, #tpu.memory_space<vmem>>, vector<1x1x128xf32>
    %44 = vector.shape_cast %43 : vector<1x1x128xf32> to vector<1x128xf32>
    %45 = vector.broadcast %44 : vector<1x128xf32> to vector<64x128xf32>
    %46 = arith.addf %42, %45 : vector<64x128xf32>
    %cst_34 = arith.constant 0.000000e+00 : f32
    %47 = vector.broadcast %cst_34 : f32 to vector<64x128xf32>
    %48 = arith.maximumf %46, %47 : vector<64x128xf32>
    %49 = arith.truncf %48 : vector<64x128xf32> to vector<64x128xbf16>
    %c0_35 = arith.constant 0 : index
    %c0_36 = arith.constant 0 : index
    %50 = vector.load %arg6[%c0_35, %c0_36] : memref<128x128xbf16, #tpu.memory_space<vmem>>, vector<128x128xbf16>
    %cst_37 = arith.constant dense<0.000000e+00> : vector<64x128xf32>
    %51 = tpu.matmul %49, %50, %cst_37 {dimension_numbers = #tpu.dot_dimension_numbers<[1], [0], [0], [1], [0, 0, 1, 1], [], []>} : vector<64x128xbf16>, vector<128x128xbf16>, vector<64x128xf32> -> vector<64x128xf32>
    %c0_38 = arith.constant 0 : index
    %c0_39 = arith.constant 0 : index
    %52 = vector.load %arg7[%c0_38, %c0_39] : memref<1x128xf32, #tpu.memory_space<vmem>>, vector<1x128xf32>
    %53 = vector.broadcast %52 : vector<1x128xf32> to vector<64x128xf32>
    %54 = arith.addf %51, %53 : vector<64x128xf32>
    %55 = arith.truncf %54 : vector<64x128xf32> to vector<64x128xbf16>
    %c0_40 = arith.constant 0 : index
    %c0_41 = arith.constant 0 : index
    %56 = vector.load %arg8[%c0_40, %c0_41] : memref<64x128xbf16, #tpu.memory_space<vmem>>, vector<64x128xbf16>
    tpu.vector_store %arg8[%c0_40, %c0_41], %55 {strides = array<i32>} : memref<64x128xbf16, #tpu.memory_space<vmem>>, vector<64x128xbf16>,
    return
  }
  func.func @transform_0(%arg0: i32) -> (i32, i32) {
    %c0_i32 = arith.constant 0 : i32
    %c0_i32_0 = arith.constant 0 : i32
    return %arg0, %c0_i32 : i32, i32
  }
  func.func @transform_1(%arg0: i32) -> (i32, i32) {
    %c0_i32 = arith.constant 0 : i32
    %c0_i32_0 = arith.constant 0 : i32
    %c0_i32_1 = arith.constant 0 : i32
    return %c0_i32, %c0_i32_0 : i32, i32
  }
  func.func @transform_2(%arg0: i32) -> (i32, i32) {
    %c0_i32 = arith.constant 0 : i32
    %c0_i32_0 = arith.constant 0 : i32
    %c0_i32_1 = arith.constant 0 : i32
    return %c0_i32, %c0_i32_0 : i32, i32
  }
  func.func @transform_3(%arg0: i32) -> (i32, i32, i32) {
    %c0_i32 = arith.constant 0 : i32
    %c0_i32_0 = arith.constant 0 : i32
    %c0_i32_1 = arith.constant 0 : i32
    %c0_i32_2 = arith.constant 0 : i32
    return %c0_i32, %c0_i32_0, %c0_i32_1 : i32, i32, i32
  }
  func.func @transform_4(%arg0: i32) -> (i32, i32, i32) {
    %c0_i32 = arith.constant 0 : i32
    %c0_i32_0 = arith.constant 0 : i32
    %c0_i32_1 = arith.constant 0 : i32
    %c0_i32_2 = arith.constant 0 : i32
    return %c0_i32, %c0_i32_0, %c0_i32_1 : i32, i32, i32
  }
  func.func @transform_5(%arg0: i32) -> (i32, i32) {
    %c0_i32 = arith.constant 0 : i32
    %c0_i32_0 = arith.constant 0 : i32
    %c0_i32_1 = arith.constant 0 : i32
    return %c0_i32, %c0_i32_0 : i32, i32
  }
  func.func @transform_6(%arg0: i32) -> (i32, i32) {
    %c0_i32 = arith.constant 0 : i32
    %c0_i32_0 = arith.constant 0 : i32
    %c0_i32_1 = arith.constant 0 : i32
    return %c0_i32, %c0_i32_0 : i32, i32
  }
  func.func @transform_7(%arg0: i32) -> (i32, i32) {
    %c0_i32 = arith.constant 0 : i32
    %c0_i32_0 = arith.constant 0 : i32
    return %arg0, %c0_i32 : i32, i32
  }
}

module attributes {stable_mosaic.version = 11 : i64} {
  func.func @_dnn_kernel(%arg0: i32, %arg1: memref<64x256xf32, #tpu.memory_space<vmem>>, %arg2: memref<256x128xbf16, #tpu.memory_space<vmem>>, %arg3: memref<1x128xf32, #tpu.memory_space<vmem>>, %arg4: memref<4x128x128xbf16, #tpu.memory_space<vmem>>, %arg5: memref<4x1x128xf32, #tpu.memory_space<vmem>>, %arg6: memref<128x128xbf16, #tpu.memory_space<vmem>>, %arg7: memref<1x128xf32, #tpu.memory_space<vmem>>, %arg8: memref<64x128xbf16, #tpu.memory_space<vmem>>) attributes {dimension_semantics = [#tpu.dimension_semantics<parallel>], iteration_bounds = array<i64: 1>, scalar_prefetch = 0 : i64, scratch_operands = 0 : i64, tpu.core_type = #tpu.core_type<tc>, window_params = [{transform_indices = @transform_0, window_bounds = array<i64: 64, 256>}, {pipeline_mode = #tpu.pipeline_mode<synchronous>, transform_indices = @transform_1, window_bounds = array<i64: 256, 128>}, {pipeline_mode = #tpu.pipeline_mode<synchronous>, transform_indices = @transform_2, window_bounds = array<i64: 1, 128>}, {pipeline_mode = #tpu.pipeline_mode<synchronous>, transform_indices = @transform_3, window_bounds = array<i64: 4, 128, 128>}, {pipeline_mode = #tpu.pipeline_mode<synchronous>, transform_indices = @transform_4, window_bounds = array<i64: 4, 1, 128>}, {pipeline_mode = #tpu.pipeline_mode<synchronous>, transform_indices = @transform_5, window_bounds = array<i64: 128, 128>}, {pipeline_mode = #tpu.pipeline_mode<synchronous>, transform_indices = @transform_6, window_bounds = array<i64: 1, 128>}, {transform_indices = @transform_7, window_bounds = array<i64: 64, 128>}]} {
    %c0 = arith.constant 0 : index
    %c0_0 = arith.constant 0 : index
    %0 = vector.load %arg1[%c0, %c0_0] : memref<64x256xf32, #tpu.memory_space<vmem>>, vector<64x256xf32>
    %1 = arith.truncf %0 : vector<64x256xf32> to vector<64x256xbf16>
    %c0_1 = arith.constant 0 : index
    %c0_2 = arith.constant 0 : index
    %2 = vector.load %arg2[%c0_1, %c0_2] : memref<256x128xbf16, #tpu.memory_space<vmem>>, vector<256x128xbf16>
    %cst = arith.constant dense<0.000000e+00> : vector<64x128xf32>
    %3 = tpu.matmul %1, %2, %cst {dimension_numbers = #tpu.dot_dimension_numbers<[1], [0], [0], [1], [0, 0, 1, 1], [], []>} : vector<64x256xbf16>, vector<256x128xbf16>, vector<64x128xf32> -> vector<64x128xf32>
    %c0_3 = arith.constant 0 : index
    %c0_4 = arith.constant 0 : index
    %4 = vector.load %arg3[%c0_3, %c0_4] : memref<1x128xf32, #tpu.memory_space<vmem>>, vector<1x128xf32>
    %5 = vector.broadcast %4 : vector<1x128xf32> to vector<64x128xf32>
    %6 = arith.addf %3, %5 : vector<64x128xf32>
    %cst_5 = arith.constant 0.000000e+00 : f32
    %7 = vector.broadcast %cst_5 : f32 to vector<64x128xf32>
    %8 = arith.maximumf %6, %7 : vector<64x128xf32>
    %9 = arith.truncf %8 : vector<64x128xf32> to vector<64x128xbf16>
    %c0_6 = arith.constant 0 : index
    %c0_7 = arith.constant 0 : index
    %c0_8 = arith.constant 0 : index
    %10 = vector.load %arg4[%c0_6, %c0_7, %c0_8] : memref<4x128x128xbf16, #tpu.memory_space<vmem>>, vector<1x128x128xbf16>
    %11 = vector.shape_cast %10 : vector<1x128x128xbf16> to vector<128x128xbf16>
    %cst_9 = arith.constant dense<0.000000e+00> : vector<64x128xf32>
    %12 = tpu.matmul %9, %11, %cst_9 {dimension_numbers = #tpu.dot_dimension_numbers<[1], [0], [0], [1], [0, 0, 1, 1], [], []>} : vector<64x128xbf16>, vector<128x128xbf16>, vector<64x128xf32> -> vector<64x128xf32>
    %c0_10 = arith.constant 0 : index
    %c0_11 = arith.constant 0 : index
    %c0_12 = arith.constant 0 : index
    %13 = vector.load %arg5[%c0_10, %c0_11, %c0_12] : memref<4x1x128xf32, #tpu.memory_space<vmem>>, vector<1x1x128xf32>
    %14 = vector.shape_cast %13 : vector<1x1x128xf32> to vector<1x128xf32>
    %15 = vector.broadcast %14 : vector<1x128xf32> to vector<64x128xf32>
    %16 = arith.addf %12, %15 : vector<64x128xf32>
    %cst_13 = arith.constant 0.000000e+00 : f32
    %17 = vector.broadcast %cst_13 : f32 to vector<64x128xf32>
    %18 = arith.maximumf %16, %17 : vector<64x128xf32>
    %19 = arith.truncf %18 : vector<64x128xf32> to vector<64x128xbf16>
    %c1 = arith.constant 1 : index
    %c0_14 = arith.constant 0 : index
    %c0_15 = arith.constant 0 : index
    %20 = vector.load %arg4[%c1, %c0_14, %c0_15] : memref<4x128x128xbf16, #tpu.memory_space<vmem>>, vector<1x128x128xbf16>
    %21 = vector.shape_cast %20 : vector<1x128x128xbf16> to vector<128x128xbf16>
    %cst_16 = arith.constant dense<0.000000e+00> : vector<64x128xf32>
    %22 = tpu.matmul %19, %21, %cst_16 {dimension_numbers = #tpu.dot_dimension_numbers<[1], [0], [0], [1], [0, 0, 1, 1], [], []>} : vector<64x128xbf16>, vector<128x128xbf16>, vector<64x128xf32> -> vector<64x128xf32>
    %c1_17 = arith.constant 1 : index
    %c0_18 = arith.constant 0 : index
    %c0_19 = arith.constant 0 : index
    %23 = vector.load %arg5[%c1_17, %c0_18, %c0_19] : memref<4x1x128xf32, #tpu.memory_space<vmem>>, vector<1x1x128xf32>
    %24 = vector.shape_cast %23 : vector<1x1x128xf32> to vector<1x128xf32>
    %25 = vector.broadcast %24 : vector<1x128xf32> to vector<64x128xf32>
    %26 = arith.addf %22, %25 : vector<64x128xf32>
    %cst_20 = arith.constant 0.000000e+00 : f32
    %27 = vector.broadcast %cst_20 : f32 to vector<64x128xf32>
    %28 = arith.maximumf %26, %27 : vector<64x128xf32>
    %29 = arith.truncf %28 : vector<64x128xf32> to vector<64x128xbf16>
    %c2 = arith.constant 2 : index
    %c0_21 = arith.constant 0 : index
    %c0_22 = arith.constant 0 : index
    %30 = vector.load %arg4[%c2, %c0_21, %c0_22] : memref<4x128x128xbf16, #tpu.memory_space<vmem>>, vector<1x128x128xbf16>
    %31 = vector.shape_cast %30 : vector<1x128x128xbf16> to vector<128x128xbf16>
    %cst_23 = arith.constant dense<0.000000e+00> : vector<64x128xf32>
    %32 = tpu.matmul %29, %31, %cst_23 {dimension_numbers = #tpu.dot_dimension_numbers<[1], [0], [0], [1], [0, 0, 1, 1], [], []>} : vector<64x128xbf16>, vector<128x128xbf16>, vector<64x128xf32> -> vector<64x128xf32>
    %c2_24 = arith.constant 2 : index
    %c0_25 = arith.constant 0 : index
    %c0_26 = arith.constant 0 : index
    %33 = vector.load %arg5[%c2_24, %c0_25, %c0_26] : memref<4x1x128xf32, #tpu.memory_space<vmem>>, vector<1x1x128xf32>
    %34 = vector.shape_cast %33 : vector<1x1x128xf32> to vector<1x128xf32>
    %35 = vector.broadcast %34 : vector<1x128xf32> to vector<64x128xf32>
    %36 = arith.addf %32, %35 : vector<64x128xf32>
    %cst_27 = arith.constant 0.000000e+00 : f32
    %37 = vector.broadcast %cst_27 : f32 to vector<64x128xf32>
    %38 = arith.maximumf %36, %37 : vector<64x128xf32>
    %39 = arith.truncf %38 : vector<64x128xf32> to vector<64x128xbf16>
    %c3 = arith.constant 3 : index
    %c0_28 = arith.constant 0 : index
    %c0_29 = arith.constant 0 : index
    %40 = vector.load %arg4[%c3, %c0_28, %c0_29] : memref<4x128x128xbf16, #tpu.memory_space<vmem>>, vector<1x128x128xbf16>
    %41 = vector.shape_cast %40 : vector<1x128x128xbf16> to vector<128x128xbf16>
    %cst_30 = arith.constant dense<0.000000e+00> : vector<64x128xf32>
    %42 = tpu.matmul %39, %41, %cst_30 {dimension_numbers = #tpu.dot_dimension_numbers<[1], [0], [0], [1], [0, 0, 1, 1], [], []>} : vector<64x128xbf16>, vector<128x128xbf16>, vector<64x128xf32> -> vector<64x128xf32>
    %c3_31 = arith.constant 3 : index
    %c0_32 = arith.constant 0 : index
    %c0_33 = arith.constant 0 : index
    %43 = vector.load %arg5[%c3_31, %c0_32, %c0_33] : memref<4x1x128xf32, #tpu.memory_space<vmem>>, vector<1x1x128xf32>
    %44 = vector.shape_cast %43 : vector<1x1x128xf32> to vector<1x128xf32>
    %45 = vector.broadcast %44 : vector<1x128xf32> to vector<64x128xf32>
    %46 = arith.addf %42, %45 : vector<64x128xf32>
    %cst_34 = arith.constant 0.000000e+00 : f32
    %47 = vector.broadcast %cst_34 : f32 to vector<64x128xf32>
    %48 = arith.maximumf %46, %47 : vector<64x128xf32>
    %49 = arith.truncf %48 : vector<64x128xf32> to vector<64x128xbf16>
    %c0_35 = arith.constant 0 : index
    %c0_36 = arith.constant 0 : index
    %50 = vector.load %arg6[%c0_35, %c0_36] : memref<128x128xbf16, #tpu.memory_space<vmem>>, vector<128x128xbf16>
    %cst_37 = arith.constant dense<0.000000e+00> : vector<64x128xf32>
    %51 = tpu.matmul %49, %50, %cst_37 {dimension_numbers = #tpu.dot_dimension_numbers<[1], [0], [0], [1], [0, 0, 1, 1], [], []>} : vector<64x128xbf16>, vector<128x128xbf16>, vector<64x128xf32> -> vector<64x128xf32>
    %c0_38 = arith.constant 0 : index
    %c0_39 = arith.constant 0 : index
    %52 = vector.load %arg7[%c0_38, %c0_39] : memref<1x128xf32, #tpu.memory_space<vmem>>, vector<1x128xf32>
    %53 = vector.broadcast %52 : vector<1x128xf32> to vector<64x128xf32>
    %54 = arith.addf %51, %53 : vector<64x128xf32>
    %55 = arith.truncf %54 : vector<64x128xf32> to vector<64x128xbf16>
    %c0_40 = arith.constant 0 : index
    %c0_41 = arith.constant 0 : index
    %56 = vector.load %arg8[%c0_40, %c0_41] : memref<64x128xbf16, #tpu.memory_space<vmem>>, vector<64x128xbf16>
    tpu.vector_store %arg8[%c0_40, %c0_41], %55 {strides = array<i32>} : memref<64x128xbf16, #tpu.memory_space<vmem>>, vector<64x128xbf16>,
    return
  }
  func.func @transform_0(%arg0: i32) -> (i32, i32) {
    %c0_i32 = arith.constant 0 : i32
    %c0_i32_0 = arith.constant 0 : i32
    return %arg0, %c0_i32 : i32, i32
  }
  func.func @transform_1(%arg0: i32) -> (i32, i32) {
    %c0_i32 = arith.constant 0 : i32
    %c0_i32_0 = arith.constant 0 : i32
    %c0_i32_1 = arith.constant 0 : i32
    return %c0_i32, %c0_i32_0 : i32, i32
  }
  func.func @transform_2(%arg0: i32) -> (i32, i32) {
    %c0_i32 = arith.constant 0 : i32
    %c0_i32_0 = arith.constant 0 : i32
    %c0_i32_1 = arith.constant 0 : i32
    return %c0_i32, %c0_i32_0 : i32, i32
  }
  func.func @transform_3(%arg0: i32) -> (i32, i32, i32) {
    %c0_i32 = arith.constant 0 : i32
    %c0_i32_0 = arith.constant 0 : i32
    %c0_i32_1 = arith.constant 0 : i32
    %c0_i32_2 = arith.constant 0 : i32
    return %c0_i32, %c0_i32_0, %c0_i32_1 : i32, i32, i32
  }
  func.func @transform_4(%arg0: i32) -> (i32, i32, i32) {
    %c0_i32 = arith.constant 0 : i32
    %c0_i32_0 = arith.constant 0 : i32
    %c0_i32_1 = arith.constant 0 : i32
    %c0_i32_2 = arith.constant 0 : i32
    return %c0_i32, %c0_i32_0, %c0_i32_1 : i32, i32, i32
  }
  func.func @transform_5(%arg0: i32) -> (i32, i32) {
    %c0_i32 = arith.constant 0 : i32
    %c0_i32_0 = arith.constant 0 : i32
    %c0_i32_1 = arith.constant 0 : i32
    return %c0_i32, %c0_i32_0 : i32, i32
  }
  func.func @transform_6(%arg0: i32) -> (i32, i32) {
    %c0_i32 = arith.constant 0 : i32
    %c0_i32_0 = arith.constant 0 : i32
    %c0_i32_1 = arith.constant 0 : i32
    return %c0_i32, %c0_i32_0 : i32, i32
  }
  func.func @transform_7(%arg0: i32) -> (i32, i32) {
    %c0_i32 = arith.constant 0 : i32
    %c0_i32_0 = arith.constant 0 : i32
    return %arg0, %c0_i32 : i32, i32
  }
}

</mosaic_0001>

<llo_original>
// kernel: tpu_custom_call.1
$region0: #{tpu_custom_call.1}
  #allocation0 [shape = 'u32[]', space=smem, size = 0x4, offset = 0x4, fixed_abs, tag = 'smem constant byte address 0x4 - core index']
  #allocation1 [shape = 'u32[144,128]{1,0:T(1,128)}', space=vmem, size = 0x12000, scoped, tag = 'internal scratch']
  %s0 = inlined_call_operand.hbm [shape: f32[64,256], index: 0, kind: input, shape index: {}]
  %s1 = inlined_call_operand.hbm [shape: bf16[256,128], index: 1, kind: input, shape index: {}]
  %s2 = inlined_call_operand.vmem [shape: f32[1,128], index: 2, kind: input, shape index: {}]
  %s3 = inlined_call_operand.hbm [shape: bf16[4,128,128], index: 3, kind: input, shape index: {}]
  %s4 = inlined_call_operand.vmem [shape: f32[4,1,128], index: 4, kind: input, shape index: {}]
  %s5 = inlined_call_operand.hbm [shape: bf16[128,128], index: 5, kind: input, shape index: {}]
  %s6 = inlined_call_operand.vmem [shape: f32[1,128], index: 6, kind: input, shape index: {}]
  %s7 = inlined_call_operand.hbm [shape: bf16[64,128], index: 7, kind: output, shape index: {}]
  %s8 = sld [smem:[#allocation0]]
  $region54: #{tpu_custom_call.1} parent=0
    _
  %s10 = ssub.s32 1, %s8
  %s11 = scalar_select 0, %s10, %s8
  $region1: #{tpu_custom_call.1} parent=0
    #allocation2 [shape = 'u8[65536]{0}', space=vmem, size = 0x10000, scoped, tag = 'input window, operand 0, single buffered']
    #allocation3 [shape = 's32[1]{0}', space=sflag, size = 0x4, scoped, tag = 'scoped memory for tpu_custom_call.1']
    #allocation4 [shape = 's32[1]{0}', space=sflag, size = 0x4, scoped, tag = 'scoped memory for tpu_custom_call.1']
    #allocation5 [shape = 'u8[65536]{0}', space=vmem, size = 0x10000, scoped, tag = 'input window, operand 1, single buffered']
    #allocation6 [shape = 's32[1]{0}', space=sflag, size = 0x4, scoped, tag = 'scoped memory for tpu_custom_call.1']
    #allocation7 [shape = 'u8[131072]{0}', space=vmem, size = 0x20000, scoped, tag = 'input window, operand 3, single buffered']
    #allocation8 [shape = 'u8[32768]{0}', space=vmem, size = 0x8000, scoped, tag = 'input window, operand 5, single buffered']
    #allocation9 [shape = 's32[1]{0}', space=sflag, size = 0x4, scoped, tag = 'scoped memory for tpu_custom_call.1']
    #allocation10 [shape = 'u8[16384]{0}', space=vmem, size = 0x4000, scoped, tag = 'output window, operand 0, single buffered']
    %12 = vsyncpa [#allocation3], 0
    %13 = vsyncpa [#allocation6], 0
    %14 = vsyncpa [#allocation9], 0
    %15 = vsyncpa [#allocation4], 0
    // Predicated region
    $region2: #{tpu_custom_call.1} parent=1 // pred_check
      _
    $region3: #{tpu_custom_call.1} parent=1 // pred_check_branch
      %17 = sbr.rel (0) target = $region5
    $region4: #{tpu_custom_call.1} parent=1 // pred_region
      %s19 = ssub.s32 2048, 2048
      %20 = vsyncadd [#allocation3], %s19
      %s21 = sshll.u32 [#allocation2], 4
      %s22 = int_to_ptr.vmem [resolvable:$true] %s21
      %27 = dma.hbm_to_vmem [thread:$0]  %s0, 2048, %s22, [#allocation3], 256, 256, 16
    $region5: #{tpu_custom_call.1} parent=1 // pred_fallthru
      _
    // Predicated region
    $region6: #{tpu_custom_call.1} parent=1 // pred_check
      _
    $region7: #{tpu_custom_call.1} parent=1 // pred_check_branch
      %29 = sbr.rel (0) target = $region9
    $region8: #{tpu_custom_call.1} parent=1 // pred_region
      %s31 = ssub.s32 2048, 2048
      %32 = vsyncadd [#allocation6], %s31
      %s33 = sshll.u32 [#allocation5], 4
      %s34 = int_to_ptr.vmem [resolvable:$true] %s33
      %39 = dma.hbm_to_vmem [thread:$0]  %s1, 2048, %s34, [#allocation6], 64, 64, 4
    $region9: #{tpu_custom_call.1} parent=1 // pred_fallthru
      _
    // Predicated region
    $region10: #{tpu_custom_call.1} parent=1 // pred_check
      _
    $region11: #{tpu_custom_call.1} parent=1 // pred_check_branch
      %41 = sbr.rel (0) target = $region13
    $region12: #{tpu_custom_call.1} parent=1 // pred_region
      _
    $region13: #{tpu_custom_call.1} parent=1 // pred_fallthru
      _
    // Predicated region
    $region14: #{tpu_custom_call.1} parent=1 // pred_check
      _
    $region15: #{tpu_custom_call.1} parent=1 // pred_check_branch
      %43 = sbr.rel (0) target = $region17
    $region16: #{tpu_custom_call.1} parent=1 // pred_region
      %s45 = ssub.s32 4096, 4096
      %46 = vsyncadd [#allocation6], %s45
      %s47 = sshll.u32 [#allocation7], 4
      %s48 = int_to_ptr.vmem [resolvable:$true] %s47
      %53 = dma.hbm_to_vmem [thread:$0]  %s3, 4096, %s48, [#allocation6], 64, 64, 4
    $region17: #{tpu_custom_call.1} parent=1 // pred_fallthru
      _
    // Predicated region
    $region18: #{tpu_custom_call.1} parent=1 // pred_check
      _
    $region19: #{tpu_custom_call.1} parent=1 // pred_check_branch
      %55 = sbr.rel (0) target = $region21
    $region20: #{tpu_custom_call.1} parent=1 // pred_region
      _
    $region21: #{tpu_custom_call.1} parent=1 // pred_fallthru
      _
    // Predicated region
    $region22: #{tpu_custom_call.1} parent=1 // pred_check
      _
    $region23: #{tpu_custom_call.1} parent=1 // pred_check_branch
      %57 = sbr.rel (0) target = $region25
    $region24: #{tpu_custom_call.1} parent=1 // pred_region
      %s59 = ssub.s32 1024, 1024
      %60 = vsyncadd [#allocation9], %s59
      %s61 = sshll.u32 [#allocation8], 4
      %s62 = int_to_ptr.vmem [resolvable:$true] %s61
      %67 = dma.hbm_to_vmem [thread:$0]  %s5, 1024, %s62, [#allocation9], 64, 64, 4
    $region25: #{tpu_custom_call.1} parent=1 // pred_fallthru
      _
    // Predicated region
    $region26: #{tpu_custom_call.1} parent=1 // pred_check
      _
    $region27: #{tpu_custom_call.1} parent=1 // pred_check_branch
      %69 = sbr.rel (0) target = $region29
    $region28: #{tpu_custom_call.1} parent=1 // pred_region
      _
    $region29: #{tpu_custom_call.1} parent=1 // pred_fallthru
      _
    // Predicated region
    $region30: #{tpu_custom_call.1} parent=1 // pred_check
      _
    $region31: #{tpu_custom_call.1} parent=1 // pred_check_branch
      %71 = sbr.rel (0) target = $region33
    $region32: #{tpu_custom_call.1} parent=1 // pred_region
      %72 = dma.done [#allocation3], 2048
    $region33: #{tpu_custom_call.1} parent=1 // pred_fallthru
      _
    // Predicated region
    $region34: #{tpu_custom_call.1} parent=1 // pred_check
      _
    $region35: #{tpu_custom_call.1} parent=1 // pred_check_branch
      %74 = sbr.rel (0) target = $region37
    $region36: #{tpu_custom_call.1} parent=1 // pred_region
      %75 = dma.done [#allocation6], 2048
    $region37: #{tpu_custom_call.1} parent=1 // pred_fallthru
      _
    // Predicated region
    $region38: #{tpu_custom_call.1} parent=1 // pred_check
      _
    $region39: #{tpu_custom_call.1} parent=1 // pred_check_branch
      %77 = sbr.rel (0) target = $region41
    $region40: #{tpu_custom_call.1} parent=1 // pred_region
      %78 = dma.done [#allocation6], 4096
    $region41: #{tpu_custom_call.1} parent=1 // pred_fallthru
      _
    // Predicated region
    $region42: #{tpu_custom_call.1} parent=1 // pred_check
      _
    $region43: #{tpu_custom_call.1} parent=1 // pred_check_branch
      %80 = sbr.rel (0) target = $region45
    $region44: #{tpu_custom_call.1} parent=1 // pred_region
      %81 = dma.done [#allocation9], 1024
    $region45: #{tpu_custom_call.1} parent=1 // pred_fallthru
      _
    %v83 = vld [vmem:[#allocation2] sm:$0xff]
    %v84 = vld [vmem:[#allocation2 + $0x8] sm:$0xff]
    %v85 = vld [vmem:[#allocation2 + $0x10] sm:$0xff]
    %v86 = vld [vmem:[#allocation2 + $0x18] sm:$0xff]
    %v87 = vld [vmem:[#allocation2 + $0x20] sm:$0xff]
    %v88 = vld [vmem:[#allocation2 + $0x28] sm:$0xff]
    %v89 = vld [vmem:[#allocation2 + $0x30] sm:$0xff]
    %v90 = vld [vmem:[#allocation2 + $0x38] sm:$0xff]
    %v91 = vld [vmem:[#allocation2 + $0x40] sm:$0xff]
    %v92 = vld [vmem:[#allocation2 + $0x48] sm:$0xff]
    %v93 = vld [vmem:[#allocation2 + $0x50] sm:$0xff]
    %v94 = vld [vmem:[#allocation2 + $0x58] sm:$0xff]
    %v95 = vld [vmem:[#allocation2 + $0x60] sm:$0xff]
    %v96 = vld [vmem:[#allocation2 + $0x68] sm:$0xff]
    %v97 = vld [vmem:[#allocation2 + $0x70] sm:$0xff]
    %v98 = vld [vmem:[#allocation2 + $0x78] sm:$0xff]
    %v99 = vpack.c.bf16 %v85, %v83
    %v100 = vpack.c.bf16 %v86, %v84
    %v101 = vpack.c.bf16 %v89, %v87
    %v102 = vpack.c.bf16 %v90, %v88
    %v103 = vpack.c.bf16 %v93, %v91
    %v104 = vpack.c.bf16 %v94, %v92
    %v105 = vpack.c.bf16 %v97, %v95
    %v106 = vpack.c.bf16 %v98, %v96
    %v107 = vld [vmem:[#allocation5] sm:$0xf]
    %v108 = vld [vmem:[#allocation5 + $0x4] sm:$0xf]
    %v109 = vld [vmem:[#allocation5 + $0x8] sm:$0xf]
    %v110 = vld [vmem:[#allocation5 + $0xc] sm:$0xf]
    %v111 = vld [vmem:[#allocation5 + $0x10] sm:$0xf]
    %v112 = vld [vmem:[#allocation5 + $0x14] sm:$0xf]
    %v113 = vld [vmem:[#allocation5 + $0x18] sm:$0xf]
    %v114 = vld [vmem:[#allocation5 + $0x1c] sm:$0xf]
    %v115 = vld [vmem:[#allocation5 + $0x20] sm:$0xf]
    %v116 = vld [vmem:[#allocation5 + $0x24] sm:$0xf]
    %v117 = vld [vmem:[#allocation5 + $0x28] sm:$0xf]
    %v118 = vld [vmem:[#allocation5 + $0x2c] sm:$0xf]
    %v119 = vld [vmem:[#allocation5 + $0x30] sm:$0xf]
    %v120 = vld [vmem:[#allocation5 + $0x34] sm:$0xf]
    %v121 = vld [vmem:[#allocation5 + $0x38] sm:$0xf]
    %v122 = vld [vmem:[#allocation5 + $0x3c] sm:$0xf]
    %v123 = vld [vmem:[#allocation5 + $0x40] sm:$0xf]
    %v124 = vld [vmem:[#allocation5 + $0x44] sm:$0xf]
    %v125 = vld [vmem:[#allocation5 + $0x48] sm:$0xf]
    %v126 = vld [vmem:[#allocation5 + $0x4c] sm:$0xf]
    %v127 = vld [vmem:[#allocation5 + $0x50] sm:$0xf]
    %v128 = vld [vmem:[#allocation5 + $0x54] sm:$0xf]
    %v129 = vld [vmem:[#allocation5 + $0x58] sm:$0xf]
    %v130 = vld [vmem:[#allocation5 + $0x5c] sm:$0xf]
    %v131 = vld [vmem:[#allocation5 + $0x60] sm:$0xf]
    %v132 = vld [vmem:[#allocation5 + $0x64] sm:$0xf]
    %v133 = vld [vmem:[#allocation5 + $0x68] sm:$0xf]
    %v134 = vld [vmem:[#allocation5 + $0x6c] sm:$0xf]
    %v135 = vld [vmem:[#allocation5 + $0x70] sm:$0xf]
    %v136 = vld [vmem:[#allocation5 + $0x74] sm:$0xf]
    %v137 = vld [vmem:[#allocation5 + $0x78] sm:$0xf]
    %v138 = vld [vmem:[#allocation5 + $0x7c] sm:$0xf]
    %v139 = vld [vmem:[%s2] sm:$0x1]
    %v141 = vlaneseq
    %v142 = vshrl.u32 %v141, 7
    %v143 = vsub.s32 0, %v142
    %v144 = vrot.slane %v139, %v143
    %v178 = vunpack.c.l.b16 %v107
    %v179 = vunpack.c.l.b16 %v108
    %v180 = vunpack.c.l.b16 %v109
    %v181 = vunpack.c.l.b16 %v110
    %v182 = vunpack.c.l.b16 %v111
    %v183 = vunpack.c.l.b16 %v112
    %v184 = vunpack.c.l.b16 %v113
    %v185 = vunpack.c.l.b16 %v114
    %v186 = vunpack.c.l.b16 %v115
    %v187 = vunpack.c.l.b16 %v116
    %v188 = vunpack.c.l.b16 %v117
    %v189 = vunpack.c.l.b16 %v118
    %v190 = vunpack.c.l.b16 %v119
    %v191 = vunpack.c.l.b16 %v120
    %v192 = vunpack.c.l.b16 %v121
    %v193 = vunpack.c.l.b16 %v122
    %v194 = vunpack.c.l.b16 %v123
    %v195 = vunpack.c.l.b16 %v124
    %v196 = vunpack.c.l.b16 %v125
    %v197 = vunpack.c.l.b16 %v126
    %v198 = vunpack.c.l.b16 %v127
    %v199 = vunpack.c.l.b16 %v128
    %v200 = vunpack.c.l.b16 %v129
    %v201 = vunpack.c.l.b16 %v130
    %v202 = vunpack.c.l.b16 %v131
    %v203 = vunpack.c.l.b16 %v132
    %v204 = vunpack.c.l.b16 %v133
    %v205 = vunpack.c.l.b16 %v134
    %v206 = vunpack.c.l.b16 %v135
    %v207 = vunpack.c.l.b16 %v136
    %v208 = vunpack.c.l.b16 %v137
    %v209 = vunpack.c.l.b16 %v138
    %v210 = vpack.c.b16 %v179, %v178
    %v211 = vpack.c.b16 %v181, %v180
    %v212 = vpack.c.b16 %v183, %v182
    %v213 = vpack.c.b16 %v185, %v184
    %v214 = vpack.c.b16 %v187, %v186
    %v215 = vpack.c.b16 %v189, %v188
    %v216 = vpack.c.b16 %v191, %v190
    %v217 = vpack.c.b16 %v193, %v192
    %v218 = vpack.c.b16 %v195, %v194
    %v219 = vpack.c.b16 %v197, %v196
    %v220 = vpack.c.b16 %v199, %v198
    %v221 = vpack.c.b16 %v201, %v200
    %v222 = vpack.c.b16 %v203, %v202
    %v223 = vpack.c.b16 %v205, %v204
    %v224 = vpack.c.b16 %v207, %v206
    %v225 = vpack.c.b16 %v209, %v208
    %242 = vmatprep.subr.bf16.mxu0 0
    %243 = vmatpush1.bf16.msra.mxu0 %v210
    %244 = vmatprep.subr.bf16.mxu0 0
    %245 = vmatpush1.bf16.msra.mxu0 %v211
    %246 = vmatprep.subr.bf16.mxu0 0
    %247 = vmatpush1.bf16.msra.mxu0 %v212
    %248 = vmatprep.subr.bf16.mxu0 0
    %249 = vmatpush1.bf16.msra.mxu0 %v213
    %250 = vmatprep.subr.bf16.mxu0 0
    %251 = vmatpush1.bf16.msra.mxu0 %v214
    %252 = vmatprep.subr.bf16.mxu0 0
    %253 = vmatpush1.bf16.msra.mxu0 %v215
    %254 = vmatprep.subr.bf16.mxu0 0
    %255 = vmatpush1.bf16.msra.mxu0 %v216
    %256 = vmatprep.subr.bf16.mxu0 0
    %257 = vmatpush1.bf16.msra.mxu0 %v217
    %258 = vmatprep.subr.bf16.mxu0 0
    %259 = vmatpush1.bf16.msra.mxu0 %v218
    %260 = vmatprep.subr.bf16.mxu0 0
    %261 = vmatpush1.bf16.msra.mxu0 %v219
    %262 = vmatprep.subr.bf16.mxu0 0
    %263 = vmatpush1.bf16.msra.mxu0 %v220
    %264 = vmatprep.subr.bf16.mxu0 0
    %265 = vmatpush1.bf16.msra.mxu0 %v221
    %266 = vmatprep.subr.bf16.mxu0 0
    %267 = vmatpush1.bf16.msra.mxu0 %v222
    %268 = vmatprep.subr.bf16.mxu0 0
    %269 = vmatpush1.bf16.msra.mxu0 %v223
    %270 = vmatprep.subr.bf16.mxu0 0
    %271 = vmatpush1.bf16.msra.mxu0 %v224
    %272 = vmatprep.subr.bf16.mxu0 0
    %273 = vmatpush1.bf16.msra.mxu0 %v225
    %274 = vmatprep.mubr.bf16.mxu0 %v100
    %275 = vmatmul.mubr.bf16.gmra.mrb[0].mxu0 %v99
    %v276 = vpop.f32.mrb[0].mxu0
    %v277 = vadd.f32 %v144, %v276
    %v278 = vpop.f32.mrb[0].mxu0
    %v279 = vpop.f32.mrb[0].mxu0
    %v280 = vadd.f32 %v144, %v279
    %v281 = vpop.f32.mrb[0].mxu0
    %282 = vmatprep.mubr.bf16.mxu0 %v102
    %283 = vmatmul.mubr.bf16.gmra.mrb[0].mxu0 %v101
    %v284 = vpop.f32.mrb[0].mxu0
    %v285 = vadd.f32 %v144, %v284
    %v286 = vpop.f32.mrb[0].mxu0
    %v287 = vpop.f32.mrb[0].mxu0
    %v288 = vadd.f32 %v144, %v287
    %v289 = vpop.f32.mrb[0].mxu0
    %290 = vmatprep.mubr.bf16.mxu0 %v104
    %291 = vmatmul.mubr.bf16.gmra.mrb[0].mxu0 %v103
    %v292 = vpop.f32.mrb[0].mxu0
    %v293 = vadd.f32 %v144, %v292
    %v294 = vpop.f32.mrb[0].mxu0
    %v295 = vpop.f32.mrb[0].mxu0
    %v296 = vadd.f32 %v144, %v295
    %v297 = vpop.f32.mrb[0].mxu0
    %298 = vmatprep.mubr.bf16.mxu0 %v106
    %299 = vmatmul.mubr.bf16.gmra.mrb[0].mxu0 %v105
    %v300 = vpop.f32.mrb[0].mxu0
    %v301 = vadd.f32 %v144, %v300
    %v302 = vpop.f32.mrb[0].mxu0
    %v303 = vpop.f32.mrb[0].mxu0
    %v304 = vadd.f32 %v144, %v303
    %v305 = vpop.f32.mrb[0].mxu0
    %306 = vdwg.mxu0
    %v307 = vmax.f32 %v277, 0.0
    %v308 = vmax.f32 %v280, 0.0
    %v309 = vmax.f32 %v285, 0.0
    %v310 = vmax.f32 %v288, 0.0
    %v311 = vmax.f32 %v293, 0.0
    %v312 = vmax.f32 %v296, 0.0
    %v313 = vmax.f32 %v301, 0.0
    %v314 = vmax.f32 %v304, 0.0
    %v315 = vpack.c.bf16 %v308, %v307
    %v316 = vpack.c.bf16 %v310, %v309
    %v317 = vpack.c.bf16 %v312, %v311
    %v318 = vpack.c.bf16 %v314, %v313
    %v319 = vld [vmem:[#allocation7] sm:$0xf]
    %v320 = vld [vmem:[#allocation7 + $0x4] sm:$0xf]
    %v321 = vld [vmem:[#allocation7 + $0x8] sm:$0xf]
    %v322 = vld [vmem:[#allocation7 + $0xc] sm:$0xf]
    %v323 = vld [vmem:[#allocation7 + $0x10] sm:$0xf]
    %v324 = vld [vmem:[#allocation7 + $0x14] sm:$0xf]
    %v325 = vld [vmem:[#allocation7 + $0x18] sm:$0xf]
    %v326 = vld [vmem:[#allocation7 + $0x1c] sm:$0xf]
    %v327 = vld [vmem:[#allocation7 + $0x20] sm:$0xf]
    %v328 = vld [vmem:[#allocation7 + $0x24] sm:$0xf]
    %v329 = vld [vmem:[#allocation7 + $0x28] sm:$0xf]
    %v330 = vld [vmem:[#allocation7 + $0x2c] sm:$0xf]
    %v331 = vld [vmem:[#allocation7 + $0x30] sm:$0xf]
    %v332 = vld [vmem:[#allocation7 + $0x34] sm:$0xf]
    %v333 = vld [vmem:[#allocation7 + $0x38] sm:$0xf]
    %v334 = vld [vmem:[#allocation7 + $0x3c] sm:$0xf]
    %v335 = vld [vmem:[%s4] sm:$0x1]
    %v337 = vlaneseq
    %v338 = vshrl.u32 %v337, 7
    %v339 = vsub.s32 0, %v338
    %v340 = vrot.slane %v335, %v339
    %v358 = vunpack.c.l.b16 %v319
    %v359 = vunpack.c.l.b16 %v320
    %v360 = vunpack.c.l.b16 %v321
    %v361 = vunpack.c.l.b16 %v322
    %v362 = vunpack.c.l.b16 %v323
    %v363 = vunpack.c.l.b16 %v324
    %v364 = vunpack.c.l.b16 %v325
    %v365 = vunpack.c.l.b16 %v326
    %v366 = vunpack.c.l.b16 %v327
    %v367 = vunpack.c.l.b16 %v328
    %v368 = vunpack.c.l.b16 %v329
    %v369 = vunpack.c.l.b16 %v330
    %v370 = vunpack.c.l.b16 %v331
    %v371 = vunpack.c.l.b16 %v332
    %v372 = vunpack.c.l.b16 %v333
    %v373 = vunpack.c.l.b16 %v334
    %v374 = vpack.c.b16 %v359, %v358
    %v375 = vpack.c.b16 %v361, %v360
    %v376 = vpack.c.b16 %v363, %v362
    %v377 = vpack.c.b16 %v365, %v364
    %v378 = vpack.c.b16 %v367, %v366
    %v379 = vpack.c.b16 %v369, %v368
    %v380 = vpack.c.b16 %v371, %v370
    %v381 = vpack.c.b16 %v373, %v372
    %390 = vmatprep.subr.bf16.mxu0 0
    %391 = vmatpush1.bf16.msra.mxu0 %v374
    %392 = vmatprep.subr.bf16.mxu0 0
    %393 = vmatpush1.bf16.msra.mxu0 %v375
    %394 = vmatprep.subr.bf16.mxu0 0
    %395 = vmatpush1.bf16.msra.mxu0 %v376
    %396 = vmatprep.subr.bf16.mxu0 0
    %397 = vmatpush1.bf16.msra.mxu0 %v377
    %398 = vmatprep.subr.bf16.mxu0 0
    %399 = vmatpush1.bf16.msra.mxu0 %v378
    %400 = vmatprep.subr.bf16.mxu0 0
    %401 = vmatpush1.bf16.msra.mxu0 %v379
    %402 = vmatprep.subr.bf16.mxu0 0
    %403 = vmatpush1.bf16.msra.mxu0 %v380
    %404 = vmatprep.subr.bf16.mxu0 0
    %405 = vmatpush1.bf16.msra.mxu0 %v381
    %406 = vmatprep.subr.bf16.mxu0 0
    %407 = vmatpush1.bf16.msra.mxu0 0
    %408 = vmatprep.subr.bf16.mxu0 0
    %409 = vmatpush1.bf16.msra.mxu0 0
    %410 = vmatprep.subr.bf16.mxu0 0
    %411 = vmatpush1.bf16.msra.mxu0 0
    %412 = vmatprep.subr.bf16.mxu0 0
    %413 = vmatpush1.bf16.msra.mxu0 0
    %414 = vmatprep.subr.bf16.mxu0 0
    %415 = vmatpush1.bf16.msra.mxu0 0
    %416 = vmatprep.subr.bf16.mxu0 0
    %417 = vmatpush1.bf16.msra.mxu0 0
    %418 = vmatprep.subr.bf16.mxu0 0
    %419 = vmatpush1.bf16.msra.mxu0 0
    %420 = vmatprep.subr.bf16.mxu0 0
    %421 = vmatpush1.bf16.msra.mxu0 0
    %422 = vmatprep.mubr.bf16.mxu0 0
    %423 = vmatmul.mubr.bf16.gmra.mrb[0].mxu0 %v315
    %v424 = vpop.f32.mrb[0].mxu0
    %v425 = vadd.f32 %v340, %v424
    %v426 = vpop.f32.mrb[0].mxu0
    %v427 = vpop.f32.mrb[0].mxu0
    %v428 = vadd.f32 %v340, %v427
    %v429 = vpop.f32.mrb[0].mxu0
    %430 = vmatprep.mubr.bf16.mxu0 0
    %431 = vmatmul.mubr.bf16.gmra.mrb[0].mxu0 %v316
    %v432 = vpop.f32.mrb[0].mxu0
    %v433 = vadd.f32 %v340, %v432
    %v434 = vpop.f32.mrb[0].mxu0
    %v435 = vpop.f32.mrb[0].mxu0
    %v436 = vadd.f32 %v340, %v435
    %v437 = vpop.f32.mrb[0].mxu0
    %438 = vmatprep.mubr.bf16.mxu0 0
    %439 = vmatmul.mubr.bf16.gmra.mrb[0].mxu0 %v317
    %v440 = vpop.f32.mrb[0].mxu0
    %v441 = vadd.f32 %v340, %v440
    %v442 = vpop.f32.mrb[0].mxu0
    %v443 = vpop.f32.mrb[0].mxu0
    %v444 = vadd.f32 %v340, %v443
    %v445 = vpop.f32.mrb[0].mxu0
    %446 = vmatprep.mubr.bf16.mxu0 0
    %447 = vmatmul.mubr.bf16.gmra.mrb[0].mxu0 %v318
    %v448 = vpop.f32.mrb[0].mxu0
    %v449 = vadd.f32 %v340, %v448
    %v450 = vpop.f32.mrb[0].mxu0
    %v451 = vpop.f32.mrb[0].mxu0
    %v452 = vadd.f32 %v340, %v451
    %v453 = vpop.f32.mrb[0].mxu0
    %454 = vdwg.mxu0
    %v455 = vmax.f32 %v425, 0.0
    %v456 = vmax.f32 %v428, 0.0
    %v457 = vmax.f32 %v433, 0.0
    %v458 = vmax.f32 %v436, 0.0
    %v459 = vmax.f32 %v441, 0.0
    %v460 = vmax.f32 %v444, 0.0
    %v461 = vmax.f32 %v449, 0.0
    %v462 = vmax.f32 %v452, 0.0
    %v463 = vpack.c.bf16 %v456, %v455
    %v464 = vpack.c.bf16 %v458, %v457
    %v465 = vpack.c.bf16 %v460, %v459
    %v466 = vpack.c.bf16 %v462, %v461
    %s467 = scalar_lea.vmem [#allocation7], 64
    %v468 = vld [vmem:[%s467] sm:$0xf]
    %v469 = vld [vmem:[%s467 + $0x4] sm:$0xf]
    %v470 = vld [vmem:[%s467 + $0x8] sm:$0xf]
    %v471 = vld [vmem:[%s467 + $0xc] sm:$0xf]
    %v472 = vld [vmem:[%s467 + $0x10] sm:$0xf]
    %v473 = vld [vmem:[%s467 + $0x14] sm:$0xf]
    %v474 = vld [vmem:[%s467 + $0x18] sm:$0xf]
    %v475 = vld [vmem:[%s467 + $0x1c] sm:$0xf]
    %v476 = vld [vmem:[%s467 + $0x20] sm:$0xf]
    %v477 = vld [vmem:[%s467 + $0x24] sm:$0xf]
    %v478 = vld [vmem:[%s467 + $0x28] sm:$0xf]
    %v479 = vld [vmem:[%s467 + $0x2c] sm:$0xf]
    %v480 = vld [vmem:[%s467 + $0x30] sm:$0xf]
    %v481 = vld [vmem:[%s467 + $0x34] sm:$0xf]
    %v482 = vld [vmem:[%s467 + $0x38] sm:$0xf]
    %v483 = vld [vmem:[%s467 + $0x3c] sm:$0xf]
    %s484 = scalar_lea.vmem %s4, 1
    %v485 = vld [vmem:[%s484] sm:$0x1]
    %v487 = vlaneseq
    %v488 = vshrl.u32 %v487, 7
    %v489 = vsub.s32 0, %v488
    %v490 = vrot.slane %v485, %v489
    %v508 = vunpack.c.l.b16 %v468
    %v509 = vunpack.c.l.b16 %v469
    %v510 = vunpack.c.l.b16 %v470
    %v511 = vunpack.c.l.b16 %v471
    %v512 = vunpack.c.l.b16 %v472
    %v513 = vunpack.c.l.b16 %v473
    %v514 = vunpack.c.l.b16 %v474
    %v515 = vunpack.c.l.b16 %v475
    %v516 = vunpack.c.l.b16 %v476
    %v517 = vunpack.c.l.b16 %v477
    %v518 = vunpack.c.l.b16 %v478
    %v519 = vunpack.c.l.b16 %v479
    %v520 = vunpack.c.l.b16 %v480
    %v521 = vunpack.c.l.b16 %v481
    %v522 = vunpack.c.l.b16 %v482
    %v523 = vunpack.c.l.b16 %v483
    %v524 = vpack.c.b16 %v509, %v508
    %v525 = vpack.c.b16 %v511, %v510
    %v526 = vpack.c.b16 %v513, %v512
    %v527 = vpack.c.b16 %v515, %v514
    %v528 = vpack.c.b16 %v517, %v516
    %v529 = vpack.c.b16 %v519, %v518
    %v530 = vpack.c.b16 %v521, %v520
    %v531 = vpack.c.b16 %v523, %v522
    %540 = vmatprep.subr.bf16.mxu0 0
    %541 = vmatpush1.bf16.msra.mxu0 %v524
    %542 = vmatprep.subr.bf16.mxu0 0
    %543 = vmatpush1.bf16.msra.mxu0 %v525
    %544 = vmatprep.subr.bf16.mxu0 0
    %545 = vmatpush1.bf16.msra.mxu0 %v526
    %546 = vmatprep.subr.bf16.mxu0 0
    %547 = vmatpush1.bf16.msra.mxu0 %v527
    %548 = vmatprep.subr.bf16.mxu0 0
    %549 = vmatpush1.bf16.msra.mxu0 %v528
    %550 = vmatprep.subr.bf16.mxu0 0
    %551 = vmatpush1.bf16.msra.mxu0 %v529
    %552 = vmatprep.subr.bf16.mxu0 0
    %553 = vmatpush1.bf16.msra.mxu0 %v530
    %554 = vmatprep.subr.bf16.mxu0 0
    %555 = vmatpush1.bf16.msra.mxu0 %v531
    %556 = vmatprep.subr.bf16.mxu0 0
    %557 = vmatpush1.bf16.msra.mxu0 0
    %558 = vmatprep.subr.bf16.mxu0 0
    %559 = vmatpush1.bf16.msra.mxu0 0
    %560 = vmatprep.subr.bf16.mxu0 0
    %561 = vmatpush1.bf16.msra.mxu0 0
    %562 = vmatprep.subr.bf16.mxu0 0
    %563 = vmatpush1.bf16.msra.mxu0 0
    %564 = vmatprep.subr.bf16.mxu0 0
    %565 = vmatpush1.bf16.msra.mxu0 0
    %566 = vmatprep.subr.bf16.mxu0 0
    %567 = vmatpush1.bf16.msra.mxu0 0
    %568 = vmatprep.subr.bf16.mxu0 0
    %569 = vmatpush1.bf16.msra.mxu0 0
    %570 = vmatprep.subr.bf16.mxu0 0
    %571 = vmatpush1.bf16.msra.mxu0 0
    %572 = vmatprep.mubr.bf16.mxu0 0
    %573 = vmatmul.mubr.bf16.gmra.mrb[0].mxu0 %v463
    %v574 = vpop.f32.mrb[0].mxu0
    %v575 = vadd.f32 %v490, %v574
    %v576 = vpop.f32.mrb[0].mxu0
    %v577 = vpop.f32.mrb[0].mxu0
    %v578 = vadd.f32 %v490, %v577
    %v579 = vpop.f32.mrb[0].mxu0
    %580 = vmatprep.mubr.bf16.mxu0 0
    %581 = vmatmul.mubr.bf16.gmra.mrb[0].mxu0 %v464
    %v582 = vpop.f32.mrb[0].mxu0
    %v583 = vadd.f32 %v490, %v582
    %v584 = vpop.f32.mrb[0].mxu0
    %v585 = vpop.f32.mrb[0].mxu0
    %v586 = vadd.f32 %v490, %v585
    %v587 = vpop.f32.mrb[0].mxu0
    %588 = vmatprep.mubr.bf16.mxu0 0
    %589 = vmatmul.mubr.bf16.gmra.mrb[0].mxu0 %v465
    %v590 = vpop.f32.mrb[0].mxu0
    %v591 = vadd.f32 %v490, %v590
    %v592 = vpop.f32.mrb[0].mxu0
    %v593 = vpop.f32.mrb[0].mxu0
    %v594 = vadd.f32 %v490, %v593
    %v595 = vpop.f32.mrb[0].mxu0
    %596 = vmatprep.mubr.bf16.mxu0 0
    %597 = vmatmul.mubr.bf16.gmra.mrb[0].mxu0 %v466
    %v598 = vpop.f32.mrb[0].mxu0
    %v599 = vadd.f32 %v490, %v598
    %v600 = vpop.f32.mrb[0].mxu0
    %v601 = vpop.f32.mrb[0].mxu0
    %v602 = vadd.f32 %v490, %v601
    %v603 = vpop.f32.mrb[0].mxu0
    %604 = vdwg.mxu0
    %v605 = vmax.f32 %v575, 0.0
    %v606 = vmax.f32 %v578, 0.0
    %v607 = vmax.f32 %v583, 0.0
    %v608 = vmax.f32 %v586, 0.0
    %v609 = vmax.f32 %v591, 0.0
    %v610 = vmax.f32 %v594, 0.0
    %v611 = vmax.f32 %v599, 0.0
    %v612 = vmax.f32 %v602, 0.0
    %v613 = vpack.c.bf16 %v606, %v605
    %v614 = vpack.c.bf16 %v608, %v607
    %v615 = vpack.c.bf16 %v610, %v609
    %v616 = vpack.c.bf16 %v612, %v611
    %s617 = scalar_lea.vmem [#allocation7], 128
    %v618 = vld [vmem:[%s617] sm:$0xf]
    %v619 = vld [vmem:[%s617 + $0x4] sm:$0xf]
    %v620 = vld [vmem:[%s617 + $0x8] sm:$0xf]
    %v621 = vld [vmem:[%s617 + $0xc] sm:$0xf]
    %v622 = vld [vmem:[%s617 + $0x10] sm:$0xf]
    %v623 = vld [vmem:[%s617 + $0x14] sm:$0xf]
    %v624 = vld [vmem:[%s617 + $0x18] sm:$0xf]
    %v625 = vld [vmem:[%s617 + $0x1c] sm:$0xf]
    %v626 = vld [vmem:[%s617 + $0x20] sm:$0xf]
    %v627 = vld [vmem:[%s617 + $0x24] sm:$0xf]
    %v628 = vld [vmem:[%s617 + $0x28] sm:$0xf]
    %v629 = vld [vmem:[%s617 + $0x2c] sm:$0xf]
    %v630 = vld [vmem:[%s617 + $0x30] sm:$0xf]
    %v631 = vld [vmem:[%s617 + $0x34] sm:$0xf]
    %v632 = vld [vmem:[%s617 + $0x38] sm:$0xf]
    %v633 = vld [vmem:[%s617 + $0x3c] sm:$0xf]
    %s634 = scalar_lea.vmem %s4, 2
    %v635 = vld [vmem:[%s634] sm:$0x1]
    %v637 = vlaneseq
    %v638 = vshrl.u32 %v637, 7
    %v639 = vsub.s32 0, %v638
    %v640 = vrot.slane %v635, %v639
    %v658 = vunpack.c.l.b16 %v618
    %v659 = vunpack.c.l.b16 %v619
    %v660 = vunpack.c.l.b16 %v620
    %v661 = vunpack.c.l.b16 %v621
    %v662 = vunpack.c.l.b16 %v622
    %v663 = vunpack.c.l.b16 %v623
    %v664 = vunpack.c.l.b16 %v624
    %v665 = vunpack.c.l.b16 %v625
    %v666 = vunpack.c.l.b16 %v626
    %v667 = vunpack.c.l.b16 %v627
    %v668 = vunpack.c.l.b16 %v628
    %v669 = vunpack.c.l.b16 %v629
    %v670 = vunpack.c.l.b16 %v630
    %v671 = vunpack.c.l.b16 %v631
    %v672 = vunpack.c.l.b16 %v632
    %v673 = vunpack.c.l.b16 %v633
    %v674 = vpack.c.b16 %v659, %v658
    %v675 = vpack.c.b16 %v661, %v660
    %v676 = vpack.c.b16 %v663, %v662
    %v677 = vpack.c.b16 %v665, %v664
    %v678 = vpack.c.b16 %v667, %v666
    %v679 = vpack.c.b16 %v669, %v668
    %v680 = vpack.c.b16 %v671, %v670
    %v681 = vpack.c.b16 %v673, %v672
    %690 = vmatprep.subr.bf16.mxu0 0
    %691 = vmatpush1.bf16.msra.mxu0 %v674
    %692 = vmatprep.subr.bf16.mxu0 0
    %693 = vmatpush1.bf16.msra.mxu0 %v675
    %694 = vmatprep.subr.bf16.mxu0 0
    %695 = vmatpush1.bf16.msra.mxu0 %v676
    %696 = vmatprep.subr.bf16.mxu0 0
    %697 = vmatpush1.bf16.msra.mxu0 %v677
    %698 = vmatprep.subr.bf16.mxu0 0
    %699 = vmatpush1.bf16.msra.mxu0 %v678
    %700 = vmatprep.subr.bf16.mxu0 0
    %701 = vmatpush1.bf16.msra.mxu0 %v679
    %702 = vmatprep.subr.bf16.mxu0 0
    %703 = vmatpush1.bf16.msra.mxu0 %v680
    %704 = vmatprep.subr.bf16.mxu0 0
    %705 = vmatpush1.bf16.msra.mxu0 %v681
    %706 = vmatprep.subr.bf16.mxu0 0
    %707 = vmatpush1.bf16.msra.mxu0 0
    %708 = vmatprep.subr.bf16.mxu0 0
    %709 = vmatpush1.bf16.msra.mxu0 0
    %710 = vmatprep.subr.bf16.mxu0 0
    %711 = vmatpush1.bf16.msra.mxu0 0
    %712 = vmatprep.subr.bf16.mxu0 0
    %713 = vmatpush1.bf16.msra.mxu0 0
    %714 = vmatprep.subr.bf16.mxu0 0
    %715 = vmatpush1.bf16.msra.mxu0 0
    %716 = vmatprep.subr.bf16.mxu0 0
    %717 = vmatpush1.bf16.msra.mxu0 0
    %718 = vmatprep.subr.bf16.mxu0 0
    %719 = vmatpush1.bf16.msra.mxu0 0
    %720 = vmatprep.subr.bf16.mxu0 0
    %721 = vmatpush1.bf16.msra.mxu0 0
    %722 = vmatprep.mubr.bf16.mxu0 0
    %723 = vmatmul.mubr.bf16.gmra.mrb[0].mxu0 %v613
    %v724 = vpop.f32.mrb[0].mxu0
    %v725 = vadd.f32 %v640, %v724
    %v726 = vpop.f32.mrb[0].mxu0
    %v727 = vpop.f32.mrb[0].mxu0
    %v728 = vadd.f32 %v640, %v727
    %v729 = vpop.f32.mrb[0].mxu0
    %730 = vmatprep.mubr.bf16.mxu0 0
    %731 = vmatmul.mubr.bf16.gmra.mrb[0].mxu0 %v614
    %v732 = vpop.f32.mrb[0].mxu0
    %v733 = vadd.f32 %v640, %v732
    %v734 = vpop.f32.mrb[0].mxu0
    %v735 = vpop.f32.mrb[0].mxu0
    %v736 = vadd.f32 %v640, %v735
    %v737 = vpop.f32.mrb[0].mxu0
    %738 = vmatprep.mubr.bf16.mxu0 0
    %739 = vmatmul.mubr.bf16.gmra.mrb[0].mxu0 %v615
    %v740 = vpop.f32.mrb[0].mxu0
    %v741 = vadd.f32 %v640, %v740
    %v742 = vpop.f32.mrb[0].mxu0
    %v743 = vpop.f32.mrb[0].mxu0
    %v744 = vadd.f32 %v640, %v743
    %v745 = vpop.f32.mrb[0].mxu0
    %746 = vmatprep.mubr.bf16.mxu0 0
    %747 = vmatmul.mubr.bf16.gmra.mrb[0].mxu0 %v616
    %v748 = vpop.f32.mrb[0].mxu0
    %v749 = vadd.f32 %v640, %v748
    %v750 = vpop.f32.mrb[0].mxu0
    %v751 = vpop.f32.mrb[0].mxu0
    %v752 = vadd.f32 %v640, %v751
    %v753 = vpop.f32.mrb[0].mxu0
    %754 = vdwg.mxu0
    %v755 = vmax.f32 %v725, 0.0
    %v756 = vmax.f32 %v728, 0.0
    %v757 = vmax.f32 %v733, 0.0
    %v758 = vmax.f32 %v736, 0.0
    %v759 = vmax.f32 %v741, 0.0
    %v760 = vmax.f32 %v744, 0.0
    %v761 = vmax.f32 %v749, 0.0
    %v762 = vmax.f32 %v752, 0.0
    %v763 = vpack.c.bf16 %v756, %v755
    %v764 = vpack.c.bf16 %v758, %v757
    %v765 = vpack.c.bf16 %v760, %v759
    %v766 = vpack.c.bf16 %v762, %v761
    %s767 = scalar_lea.vmem [#allocation7], 192
    %v768 = vld [vmem:[%s767] sm:$0xf]
    %v769 = vld [vmem:[%s767 + $0x4] sm:$0xf]
    %v770 = vld [vmem:[%s767 + $0x8] sm:$0xf]
    %v771 = vld [vmem:[%s767 + $0xc] sm:$0xf]
    %v772 = vld [vmem:[%s767 + $0x10] sm:$0xf]
    %v773 = vld [vmem:[%s767 + $0x14] sm:$0xf]
    %v774 = vld [vmem:[%s767 + $0x18] sm:$0xf]
    %v775 = vld [vmem:[%s767 + $0x1c] sm:$0xf]
    %v776 = vld [vmem:[%s767 + $0x20] sm:$0xf]
    %v777 = vld [vmem:[%s767 + $0x24] sm:$0xf]
    %v778 = vld [vmem:[%s767 + $0x28] sm:$0xf]
    %v779 = vld [vmem:[%s767 + $0x2c] sm:$0xf]
    %v780 = vld [vmem:[%s767 + $0x30] sm:$0xf]
    %v781 = vld [vmem:[%s767 + $0x34] sm:$0xf]
    %v782 = vld [vmem:[%s767 + $0x38] sm:$0xf]
    %v783 = vld [vmem:[%s767 + $0x3c] sm:$0xf]
    %s784 = scalar_lea.vmem %s4, 3
    %v785 = vld [vmem:[%s784] sm:$0x1]
    %v787 = vlaneseq
    %v788 = vshrl.u32 %v787, 7
    %v789 = vsub.s32 0, %v788
    %v790 = vrot.slane %v785, %v789
    %v808 = vunpack.c.l.b16 %v768
    %v809 = vunpack.c.l.b16 %v769
    %v810 = vunpack.c.l.b16 %v770
    %v811 = vunpack.c.l.b16 %v771
    %v812 = vunpack.c.l.b16 %v772
    %v813 = vunpack.c.l.b16 %v773
    %v814 = vunpack.c.l.b16 %v774
    %v815 = vunpack.c.l.b16 %v775
    %v816 = vunpack.c.l.b16 %v776
    %v817 = vunpack.c.l.b16 %v777
    %v818 = vunpack.c.l.b16 %v778
    %v819 = vunpack.c.l.b16 %v779
    %v820 = vunpack.c.l.b16 %v780
    %v821 = vunpack.c.l.b16 %v781
    %v822 = vunpack.c.l.b16 %v782
    %v823 = vunpack.c.l.b16 %v783
    %v824 = vpack.c.b16 %v809, %v808
    %v825 = vpack.c.b16 %v811, %v810
    %v826 = vpack.c.b16 %v813, %v812
    %v827 = vpack.c.b16 %v815, %v814
    %v828 = vpack.c.b16 %v817, %v816
    %v829 = vpack.c.b16 %v819, %v818
    %v830 = vpack.c.b16 %v821, %v820
    %v831 = vpack.c.b16 %v823, %v822
    %840 = vmatprep.subr.bf16.mxu0 0
    %841 = vmatpush1.bf16.msra.mxu0 %v824
    %842 = vmatprep.subr.bf16.mxu0 0
    %843 = vmatpush1.bf16.msra.mxu0 %v825
    %844 = vmatprep.subr.bf16.mxu0 0
    %845 = vmatpush1.bf16.msra.mxu0 %v826
    %846 = vmatprep.subr.bf16.mxu0 0
    %847 = vmatpush1.bf16.msra.mxu0 %v827
    %848 = vmatprep.subr.bf16.mxu0 0
    %849 = vmatpush1.bf16.msra.mxu0 %v828
    %850 = vmatprep.subr.bf16.mxu0 0
    %851 = vmatpush1.bf16.msra.mxu0 %v829
    %852 = vmatprep.subr.bf16.mxu0 0
    %853 = vmatpush1.bf16.msra.mxu0 %v830
    %854 = vmatprep.subr.bf16.mxu0 0
    %855 = vmatpush1.bf16.msra.mxu0 %v831
    %856 = vmatprep.subr.bf16.mxu0 0
    %857 = vmatpush1.bf16.msra.mxu0 0
    %858 = vmatprep.subr.bf16.mxu0 0
    %859 = vmatpush1.bf16.msra.mxu0 0
    %860 = vmatprep.subr.bf16.mxu0 0
    %861 = vmatpush1.bf16.msra.mxu0 0
    %862 = vmatprep.subr.bf16.mxu0 0
    %863 = vmatpush1.bf16.msra.mxu0 0
    %864 = vmatprep.subr.bf16.mxu0 0
    %865 = vmatpush1.bf16.msra.mxu0 0
    %866 = vmatprep.subr.bf16.mxu0 0
    %867 = vmatpush1.bf16.msra.mxu0 0
    %868 = vmatprep.subr.bf16.mxu0 0
    %869 = vmatpush1.bf16.msra.mxu0 0
    %870 = vmatprep.subr.bf16.mxu0 0
    %871 = vmatpush1.bf16.msra.mxu0 0
    %872 = vmatprep.mubr.bf16.mxu0 0
    %873 = vmatmul.mubr.bf16.gmra.mrb[0].mxu0 %v763
    %v874 = vpop.f32.mrb[0].mxu0
    %v875 = vadd.f32 %v790, %v874
    %v876 = vpop.f32.mrb[0].mxu0
    %v877 = vpop.f32.mrb[0].mxu0
    %v878 = vadd.f32 %v790, %v877
    %v879 = vpop.f32.mrb[0].mxu0
    %880 = vmatprep.mubr.bf16.mxu0 0
    %881 = vmatmul.mubr.bf16.gmra.mrb[0].mxu0 %v764
    %v882 = vpop.f32.mrb[0].mxu0
    %v883 = vadd.f32 %v790, %v882
    %v884 = vpop.f32.mrb[0].mxu0
    %v885 = vpop.f32.mrb[0].mxu0
    %v886 = vadd.f32 %v790, %v885
    %v887 = vpop.f32.mrb[0].mxu0
    %888 = vmatprep.mubr.bf16.mxu0 0
    %889 = vmatmul.mubr.bf16.gmra.mrb[0].mxu0 %v765
    %v890 = vpop.f32.mrb[0].mxu0
    %v891 = vadd.f32 %v790, %v890
    %v892 = vpop.f32.mrb[0].mxu0
    %v893 = vpop.f32.mrb[0].mxu0
    %v894 = vadd.f32 %v790, %v893
    %v895 = vpop.f32.mrb[0].mxu0
    %896 = vmatprep.mubr.bf16.mxu0 0
    %897 = vmatmul.mubr.bf16.gmra.mrb[0].mxu0 %v766
    %v898 = vpop.f32.mrb[0].mxu0
    %v899 = vadd.f32 %v790, %v898
    %v900 = vpop.f32.mrb[0].mxu0
    %v901 = vpop.f32.mrb[0].mxu0
    %v902 = vadd.f32 %v790, %v901
    %v903 = vpop.f32.mrb[0].mxu0
    %904 = vdwg.mxu0
    %v905 = vmax.f32 %v875, 0.0
    %v906 = vmax.f32 %v878, 0.0
    %v907 = vmax.f32 %v883, 0.0
    %v908 = vmax.f32 %v886, 0.0
    %v909 = vmax.f32 %v891, 0.0
    %v910 = vmax.f32 %v894, 0.0
    %v911 = vmax.f32 %v899, 0.0
    %v912 = vmax.f32 %v902, 0.0
    %v913 = vpack.c.bf16 %v906, %v905
    %v914 = vpack.c.bf16 %v908, %v907
    %v915 = vpack.c.bf16 %v910, %v909
    %v916 = vpack.c.bf16 %v912, %v911
    %v917 = vld [vmem:[#allocation8] sm:$0xf]
    %v918 = vld [vmem:[#allocation8 + $0x4] sm:$0xf]
    %v919 = vld [vmem:[#allocation8 + $0x8] sm:$0xf]
    %v920 = vld [vmem:[#allocation8 + $0xc] sm:$0xf]
    %v921 = vld [vmem:[#allocation8 + $0x10] sm:$0xf]
    %v922 = vld [vmem:[#allocation8 + $0x14] sm:$0xf]
    %v923 = vld [vmem:[#allocation8 + $0x18] sm:$0xf]
    %v924 = vld [vmem:[#allocation8 + $0x1c] sm:$0xf]
    %v925 = vld [vmem:[#allocation8 + $0x20] sm:$0xf]
    %v926 = vld [vmem:[#allocation8 + $0x24] sm:$0xf]
    %v927 = vld [vmem:[#allocation8 + $0x28] sm:$0xf]
    %v928 = vld [vmem:[#allocation8 + $0x2c] sm:$0xf]
    %v929 = vld [vmem:[#allocation8 + $0x30] sm:$0xf]
    %v930 = vld [vmem:[#allocation8 + $0x34] sm:$0xf]
    %v931 = vld [vmem:[#allocation8 + $0x38] sm:$0xf]
    %v932 = vld [vmem:[#allocation8 + $0x3c] sm:$0xf]
    %v933 = vld [vmem:[%s6] sm:$0x1]
    %v935 = vlaneseq
    %v936 = vshrl.u32 %v935, 7
    %v937 = vsub.s32 0, %v936
    %v938 = vrot.slane %v933, %v937
    %v956 = vunpack.c.l.b16 %v917
    %v957 = vunpack.c.l.b16 %v918
    %v958 = vunpack.c.l.b16 %v919
    %v959 = vunpack.c.l.b16 %v920
    %v960 = vunpack.c.l.b16 %v921
    %v961 = vunpack.c.l.b16 %v922
    %v962 = vunpack.c.l.b16 %v923
    %v963 = vunpack.c.l.b16 %v924
    %v964 = vunpack.c.l.b16 %v925
    %v965 = vunpack.c.l.b16 %v926
    %v966 = vunpack.c.l.b16 %v927
    %v967 = vunpack.c.l.b16 %v928
    %v968 = vunpack.c.l.b16 %v929
    %v969 = vunpack.c.l.b16 %v930
    %v970 = vunpack.c.l.b16 %v931
    %v971 = vunpack.c.l.b16 %v932
    %v972 = vpack.c.b16 %v957, %v956
    %v973 = vpack.c.b16 %v959, %v958
    %v974 = vpack.c.b16 %v961, %v960
    %v975 = vpack.c.b16 %v963, %v962
    %v976 = vpack.c.b16 %v965, %v964
    %v977 = vpack.c.b16 %v967, %v966
    %v978 = vpack.c.b16 %v969, %v968
    %v979 = vpack.c.b16 %v971, %v970
    %988 = vmatprep.subr.bf16.mxu0 0
    %989 = vmatpush1.bf16.msra.mxu0 %v972
    %990 = vmatprep.subr.bf16.mxu0 0
    %991 = vmatpush1.bf16.msra.mxu0 %v973
    %992 = vmatprep.subr.bf16.mxu0 0
    %993 = vmatpush1.bf16.msra.mxu0 %v974
    %994 = vmatprep.subr.bf16.mxu0 0
    %995 = vmatpush1.bf16.msra.mxu0 %v975
    %996 = vmatprep.subr.bf16.mxu0 0
    %997 = vmatpush1.bf16.msra.mxu0 %v976
    %998 = vmatprep.subr.bf16.mxu0 0
    %999 = vmatpush1.bf16.msra.mxu0 %v977
    %1000 = vmatprep.subr.bf16.mxu0 0
    %1001 = vmatpush1.bf16.msra.mxu0 %v978
    %1002 = vmatprep.subr.bf16.mxu0 0
    %1003 = vmatpush1.bf16.msra.mxu0 %v979
    %1004 = vmatprep.subr.bf16.mxu0 0
    %1005 = vmatpush1.bf16.msra.mxu0 0
    %1006 = vmatprep.subr.bf16.mxu0 0
    %1007 = vmatpush1.bf16.msra.mxu0 0
    %1008 = vmatprep.subr.bf16.mxu0 0
    %1009 = vmatpush1.bf16.msra.mxu0 0
    %1010 = vmatprep.subr.bf16.mxu0 0
    %1011 = vmatpush1.bf16.msra.mxu0 0
    %1012 = vmatprep.subr.bf16.mxu0 0
    %1013 = vmatpush1.bf16.msra.mxu0 0
    %1014 = vmatprep.subr.bf16.mxu0 0
    %1015 = vmatpush1.bf16.msra.mxu0 0
    %1016 = vmatprep.subr.bf16.mxu0 0
    %1017 = vmatpush1.bf16.msra.mxu0 0
    %1018 = vmatprep.subr.bf16.mxu0 0
    %1019 = vmatpush1.bf16.msra.mxu0 0
    %1020 = vmatprep.mubr.bf16.mxu0 0
    %1021 = vmatmul.mubr.bf16.gmra.mrb[0].mxu0 %v913
    %v1022 = vpop.f32.mrb[0].mxu0
    %v1023 = vadd.f32 %v938, %v1022
    %v1024 = vpop.f32.mrb[0].mxu0
    %v1025 = vpop.f32.mrb[0].mxu0
    %v1026 = vadd.f32 %v938, %v1025
    %v1027 = vpop.f32.mrb[0].mxu0
    %1028 = vmatprep.mubr.bf16.mxu0 0
    %1029 = vmatmul.mubr.bf16.gmra.mrb[0].mxu0 %v914
    %v1030 = vpop.f32.mrb[0].mxu0
    %v1031 = vadd.f32 %v938, %v1030
    %v1032 = vpop.f32.mrb[0].mxu0
    %v1033 = vpop.f32.mrb[0].mxu0
    %v1034 = vadd.f32 %v938, %v1033
    %v1035 = vpop.f32.mrb[0].mxu0
    %1036 = vmatprep.mubr.bf16.mxu0 0
    %1037 = vmatmul.mubr.bf16.gmra.mrb[0].mxu0 %v915
    %v1038 = vpop.f32.mrb[0].mxu0
    %v1039 = vadd.f32 %v938, %v1038
    %v1040 = vpop.f32.mrb[0].mxu0
    %v1041 = vpop.f32.mrb[0].mxu0
    %v1042 = vadd.f32 %v938, %v1041
    %v1043 = vpop.f32.mrb[0].mxu0
    %1044 = vmatprep.mubr.bf16.mxu0 0
    %1045 = vmatmul.mubr.bf16.gmra.mrb[0].mxu0 %v916
    %v1046 = vpop.f32.mrb[0].mxu0
    %v1047 = vadd.f32 %v938, %v1046
    %v1048 = vpop.f32.mrb[0].mxu0
    %v1049 = vpop.f32.mrb[0].mxu0
    %v1050 = vadd.f32 %v938, %v1049
    %v1051 = vpop.f32.mrb[0].mxu0
    %1052 = vdwg.mxu0
    %v1053 = vpack.c.bf16 %v1026, %v1023
    %v1054 = vpack.c.bf16 %v1034, %v1031
    %v1055 = vpack.c.bf16 %v1042, %v1039
    %v1056 = vpack.c.bf16 %v1050, %v1047
    %v1061 = vunpack.c.l.b16 %v1053
    %v1062 = vunpack.c.h.b16 %v1053
    %v1063 = vunpack.c.l.b16 %v1054
    %v1064 = vunpack.c.h.b16 %v1054
    %v1065 = vunpack.c.l.b16 %v1055
    %v1066 = vunpack.c.h.b16 %v1055
    %v1067 = vunpack.c.l.b16 %v1056
    %v1068 = vunpack.c.h.b16 %v1056
    %v1069 = vpack.c.b16 %v1061, %v1061
    %v1070 = vpack.c.b16 %v1062, %v1062
    %v1071 = vpack.c.b16 %v1063, %v1063
    %v1072 = vpack.c.b16 %v1064, %v1064
    %v1073 = vpack.c.b16 %v1065, %v1065
    %v1074 = vpack.c.b16 %v1066, %v1066
    %v1075 = vpack.c.b16 %v1067, %v1067
    %v1076 = vpack.c.b16 %v1068, %v1068
    %1085 = vst [vmem:[#allocation10] sm:$0xf] %v1069
    %1086 = vst [vmem:[#allocation10 + $0x4] sm:$0xf] %v1070
    %1087 = vst [vmem:[#allocation10 + $0x8] sm:$0xf] %v1071
    %1088 = vst [vmem:[#allocation10 + $0xc] sm:$0xf] %v1072
    %1089 = vst [vmem:[#allocation10 + $0x10] sm:$0xf] %v1073
    %1090 = vst [vmem:[#allocation10 + $0x14] sm:$0xf] %v1074
    %1091 = vst [vmem:[#allocation10 + $0x18] sm:$0xf] %v1075
    %1092 = vst [vmem:[#allocation10 + $0x1c] sm:$0xf] %v1076
    // Predicated region
    $region46: #{tpu_custom_call.1} parent=1 // pred_check
      _
    $region47: #{tpu_custom_call.1} parent=1 // pred_check_branch
      %1094 = sbr.rel (0) target = $region49
    $region48: #{tpu_custom_call.1} parent=1 // pred_region
      %s1096 = ssub.s32 512, 512
      %1097 = vsyncadd [#allocation4], %s1096
      %s1098 = sshll.u32 [#allocation10], 4
      %s1099 = int_to_ptr.vmem [resolvable:$true] %s1098
      %1104 = dma.vmem_to_hbm [thread:$0]  %s1099, 512, %s7, [#allocation4], 64, 64, 4
    $region49: #{tpu_custom_call.1} parent=1 // pred_fallthru
      _
    // Predicated region
    $region50: #{tpu_custom_call.1} parent=1 // pred_check
      _
    $region51: #{tpu_custom_call.1} parent=1 // pred_check_branch
      %1106 = sbr.rel (0) target = $region53
    $region52: #{tpu_custom_call.1} parent=1 // pred_region
      %1107 = dma.done [#allocation4], 512
    $region53: #{tpu_custom_call.1} parent=1 // pred_fallthru
      _
    %1108 = vsyncpa [#allocation3], 1
    %1109 = vsyncpa [#allocation6], 1
    %1110 = vsyncpa [#allocation9], 1
    %1111 = vsyncpa [#allocation4], 1

// kernel: tpu_custom_call.1
$region0: #{tpu_custom_call.1}
  #allocation0 [shape = 'u32[]', space=smem, size = 0x4, offset = 0x4, fixed_abs, tag = 'smem constant byte address 0x4 - core index']
  #allocation1 [shape = 'u32[144,128]{1,0:T(1,128)}', space=vmem, size = 0x12000, scoped, tag = 'internal scratch']
  %s0 = inlined_call_operand.hbm [shape: f32[64,256], index: 0, kind: input, shape index: {}]
  %s1 = inlined_call_operand.hbm [shape: bf16[256,128], index: 1, kind: input, shape index: {}]
  %s2 = inlined_call_operand.vmem [shape: f32[1,128], index: 2, kind: input, shape index: {}]
  %s3 = inlined_call_operand.hbm [shape: bf16[4,128,128], index: 3, kind: input, shape index: {}]
  %s4 = inlined_call_operand.vmem [shape: f32[4,1,128], index: 4, kind: input, shape index: {}]
  %s5 = inlined_call_operand.hbm [shape: bf16[128,128], index: 5, kind: input, shape index: {}]
  %s6 = inlined_call_operand.vmem [shape: f32[1,128], index: 6, kind: input, shape index: {}]
  %s7 = inlined_call_operand.hbm [shape: bf16[64,128], index: 7, kind: output, shape index: {}]
  %s8 = sld [smem:[#allocation0]]
  $region54: #{tpu_custom_call.1} parent=0
    _
  %s10 = ssub.s32 1, %s8
  %s11 = scalar_select 0, %s10, %s8
  $region1: #{tpu_custom_call.1} parent=0
    #allocation2 [shape = 'u8[65536]{0}', space=vmem, size = 0x10000, scoped, tag = 'input window, operand 0, single buffered']
    #allocation3 [shape = 's32[1]{0}', space=sflag, size = 0x4, scoped, tag = 'scoped memory for tpu_custom_call.1']
    #allocation4 [shape = 's32[1]{0}', space=sflag, size = 0x4, scoped, tag = 'scoped memory for tpu_custom_call.1']
    #allocation5 [shape = 'u8[65536]{0}', space=vmem, size = 0x10000, scoped, tag = 'input window, operand 1, single buffered']
    #allocation6 [shape = 's32[1]{0}', space=sflag, size = 0x4, scoped, tag = 'scoped memory for tpu_custom_call.1']
    #allocation7 [shape = 'u8[131072]{0}', space=vmem, size = 0x20000, scoped, tag = 'input window, operand 3, single buffered']
    #allocation8 [shape = 'u8[32768]{0}', space=vmem, size = 0x8000, scoped, tag = 'input window, operand 5, single buffered']
    #allocation9 [shape = 's32[1]{0}', space=sflag, size = 0x4, scoped, tag = 'scoped memory for tpu_custom_call.1']
    #allocation10 [shape = 'u8[16384]{0}', space=vmem, size = 0x4000, scoped, tag = 'output window, operand 0, single buffered']
    %12 = vsyncpa [#allocation3], 0
    %13 = vsyncpa [#allocation6], 0
    %14 = vsyncpa [#allocation9], 0
    %15 = vsyncpa [#allocation4], 0
    // Predicated region
    $region2: #{tpu_custom_call.1} parent=1 // pred_check
      _
    $region3: #{tpu_custom_call.1} parent=1 // pred_check_branch
      %17 = sbr.rel (0) target = $region5
    $region4: #{tpu_custom_call.1} parent=1 // pred_region
      %s19 = ssub.s32 2048, 2048
      %20 = vsyncadd [#allocation3], %s19
      %s21 = sshll.u32 [#allocation2], 4
      %s22 = int_to_ptr.vmem [resolvable:$true] %s21
      %27 = dma.hbm_to_vmem [thread:$0]  %s0, 2048, %s22, [#allocation3], 256, 256, 16
    $region5: #{tpu_custom_call.1} parent=1 // pred_fallthru
      _
    // Predicated region
    $region6: #{tpu_custom_call.1} parent=1 // pred_check
      _
    $region7: #{tpu_custom_call.1} parent=1 // pred_check_branch
      %29 = sbr.rel (0) target = $region9
    $region8: #{tpu_custom_call.1} parent=1 // pred_region
      %s31 = ssub.s32 2048, 2048
      %32 = vsyncadd [#allocation6], %s31
      %s33 = sshll.u32 [#allocation5], 4
      %s34 = int_to_ptr.vmem [resolvable:$true] %s33
      %39 = dma.hbm_to_vmem [thread:$0]  %s1, 2048, %s34, [#allocation6], 64, 64, 4
    $region9: #{tpu_custom_call.1} parent=1 // pred_fallthru
      _
    // Predicated region
    $region10: #{tpu_custom_call.1} parent=1 // pred_check
      _
    $region11: #{tpu_custom_call.1} parent=1 // pred_check_branch
      %41 = sbr.rel (0) target = $region13
    $region12: #{tpu_custom_call.1} parent=1 // pred_region
      _
    $region13: #{tpu_custom_call.1} parent=1 // pred_fallthru
      _
    // Predicated region
    $region14: #{tpu_custom_call.1} parent=1 // pred_check
      _
    $region15: #{tpu_custom_call.1} parent=1 // pred_check_branch
      %43 = sbr.rel (0) target = $region17
    $region16: #{tpu_custom_call.1} parent=1 // pred_region
      %s45 = ssub.s32 4096, 4096
      %46 = vsyncadd [#allocation6], %s45
      %s47 = sshll.u32 [#allocation7], 4
      %s48 = int_to_ptr.vmem [resolvable:$true] %s47
      %53 = dma.hbm_to_vmem [thread:$0]  %s3, 4096, %s48, [#allocation6], 64, 64, 4
    $region17: #{tpu_custom_call.1} parent=1 // pred_fallthru
      _
    // Predicated region
    $region18: #{tpu_custom_call.1} parent=1 // pred_check
      _
    $region19: #{tpu_custom_call.1} parent=1 // pred_check_branch
      %55 = sbr.rel (0) target = $region21
    $region20: #{tpu_custom_call.1} parent=1 // pred_region
      _
    $region21: #{tpu_custom_call.1} parent=1 // pred_fallthru
      _
    // Predicated region
    $region22: #{tpu_custom_call.1} parent=1 // pred_check
      _
    $region23: #{tpu_custom_call.1} parent=1 // pred_check_branch
      %57 = sbr.rel (0) target = $region25
    $region24: #{tpu_custom_call.1} parent=1 // pred_region
      %s59 = ssub.s32 1024, 1024
      %60 = vsyncadd [#allocation9], %s59
      %s61 = sshll.u32 [#allocation8], 4
      %s62 = int_to_ptr.vmem [resolvable:$true] %s61
      %67 = dma.hbm_to_vmem [thread:$0]  %s5, 1024, %s62, [#allocation9], 64, 64, 4
    $region25: #{tpu_custom_call.1} parent=1 // pred_fallthru
      _
    // Predicated region
    $region26: #{tpu_custom_call.1} parent=1 // pred_check
      _
    $region27: #{tpu_custom_call.1} parent=1 // pred_check_branch
      %69 = sbr.rel (0) target = $region29
    $region28: #{tpu_custom_call.1} parent=1 // pred_region
      _
    $region29: #{tpu_custom_call.1} parent=1 // pred_fallthru
      _
    // Predicated region
    $region30: #{tpu_custom_call.1} parent=1 // pred_check
      _
    $region31: #{tpu_custom_call.1} parent=1 // pred_check_branch
      %71 = sbr.rel (0) target = $region33
    $region32: #{tpu_custom_call.1} parent=1 // pred_region
      %72 = dma.done [#allocation3], 2048
    $region33: #{tpu_custom_call.1} parent=1 // pred_fallthru
      _
    // Predicated region
    $region34: #{tpu_custom_call.1} parent=1 // pred_check
      _
    $region35: #{tpu_custom_call.1} parent=1 // pred_check_branch
      %74 = sbr.rel (0) target = $region37
    $region36: #{tpu_custom_call.1} parent=1 // pred_region
      %75 = dma.done [#allocation6], 2048
    $region37: #{tpu_custom_call.1} parent=1 // pred_fallthru
      _
    // Predicated region
    $region38: #{tpu_custom_call.1} parent=1 // pred_check
      _
    $region39: #{tpu_custom_call.1} parent=1 // pred_check_branch
      %77 = sbr.rel (0) target = $region41
    $region40: #{tpu_custom_call.1} parent=1 // pred_region
      %78 = dma.done [#allocation6], 4096
    $region41: #{tpu_custom_call.1} parent=1 // pred_fallthru
      _
    // Predicated region
    $region42: #{tpu_custom_call.1} parent=1 // pred_check
      _
    $region43: #{tpu_custom_call.1} parent=1 // pred_check_branch
      %80 = sbr.rel (0) target = $region45
    $region44: #{tpu_custom_call.1} parent=1 // pred_region
      %81 = dma.done [#allocation9], 1024
    $region45: #{tpu_custom_call.1} parent=1 // pred_fallthru
      _
    %v83 = vld [vmem:[#allocation2] sm:$0xff]
    %v84 = vld [vmem:[#allocation2 + $0x8] sm:$0xff]
    %v85 = vld [vmem:[#allocation2 + $0x10] sm:$0xff]
    %v86 = vld [vmem:[#allocation2 + $0x18] sm:$0xff]
    %v87 = vld [vmem:[#allocation2 + $0x20] sm:$0xff]
    %v88 = vld [vmem:[#allocation2 + $0x28] sm:$0xff]
    %v89 = vld [vmem:[#allocation2 + $0x30] sm:$0xff]
    %v90 = vld [vmem:[#allocation2 + $0x38] sm:$0xff]
    %v91 = vld [vmem:[#allocation2 + $0x40] sm:$0xff]
    %v92 = vld [vmem:[#allocation2 + $0x48] sm:$0xff]
    %v93 = vld [vmem:[#allocation2 + $0x50] sm:$0xff]
    %v94 = vld [vmem:[#allocation2 + $0x58] sm:$0xff]
    %v95 = vld [vmem:[#allocation2 + $0x60] sm:$0xff]
    %v96 = vld [vmem:[#allocation2 + $0x68] sm:$0xff]
    %v97 = vld [vmem:[#allocation2 + $0x70] sm:$0xff]
    %v98 = vld [vmem:[#allocation2 + $0x78] sm:$0xff]
    %v99 = vpack.c.bf16 %v85, %v83
    %v100 = vpack.c.bf16 %v86, %v84
    %v101 = vpack.c.bf16 %v89, %v87
    %v102 = vpack.c.bf16 %v90, %v88
    %v103 = vpack.c.bf16 %v93, %v91
    %v104 = vpack.c.bf16 %v94, %v92
    %v105 = vpack.c.bf16 %v97, %v95
    %v106 = vpack.c.bf16 %v98, %v96
    %v107 = vld [vmem:[#allocation5] sm:$0xf]
    %v108 = vld [vmem:[#allocation5 + $0x4] sm:$0xf]
    %v109 = vld [vmem:[#allocation5 + $0x8] sm:$0xf]
    %v110 = vld [vmem:[#allocation5 + $0xc] sm:$0xf]
    %v111 = vld [vmem:[#allocation5 + $0x10] sm:$0xf]
    %v112 = vld [vmem:[#allocation5 + $0x14] sm:$0xf]
    %v113 = vld [vmem:[#allocation5 + $0x18] sm:$0xf]
    %v114 = vld [vmem:[#allocation5 + $0x1c] sm:$0xf]
    %v115 = vld [vmem:[#allocation5 + $0x20] sm:$0xf]
    %v116 = vld [vmem:[#allocation5 + $0x24] sm:$0xf]
    %v117 = vld [vmem:[#allocation5 + $0x28] sm:$0xf]
    %v118 = vld [vmem:[#allocation5 + $0x2c] sm:$0xf]
    %v119 = vld [vmem:[#allocation5 + $0x30] sm:$0xf]
    %v120 = vld [vmem:[#allocation5 + $0x34] sm:$0xf]
    %v121 = vld [vmem:[#allocation5 + $0x38] sm:$0xf]
    %v122 = vld [vmem:[#allocation5 + $0x3c] sm:$0xf]
    %v123 = vld [vmem:[#allocation5 + $0x40] sm:$0xf]
    %v124 = vld [vmem:[#allocation5 + $0x44] sm:$0xf]
    %v125 = vld [vmem:[#allocation5 + $0x48] sm:$0xf]
    %v126 = vld [vmem:[#allocation5 + $0x4c] sm:$0xf]
    %v127 = vld [vmem:[#allocation5 + $0x50] sm:$0xf]
    %v128 = vld [vmem:[#allocation5 + $0x54] sm:$0xf]
    %v129 = vld [vmem:[#allocation5 + $0x58] sm:$0xf]
    %v130 = vld [vmem:[#allocation5 + $0x5c] sm:$0xf]
    %v131 = vld [vmem:[#allocation5 + $0x60] sm:$0xf]
    %v132 = vld [vmem:[#allocation5 + $0x64] sm:$0xf]
    %v133 = vld [vmem:[#allocation5 + $0x68] sm:$0xf]
    %v134 = vld [vmem:[#allocation5 + $0x6c] sm:$0xf]
    %v135 = vld [vmem:[#allocation5 + $0x70] sm:$0xf]
    %v136 = vld [vmem:[#allocation5 + $0x74] sm:$0xf]
    %v137 = vld [vmem:[#allocation5 + $0x78] sm:$0xf]
    %v138 = vld [vmem:[#allocation5 + $0x7c] sm:$0xf]
    %v139 = vld [vmem:[%s2] sm:$0x1]
    %v141 = vlaneseq
    %v142 = vshrl.u32 %v141, 7
    %v143 = vsub.s32 0, %v142
    %v144 = vrot.slane %v139, %v143
    %v178 = vunpack.c.l.b16 %v107
    %v179 = vunpack.c.l.b16 %v108
    %v180 = vunpack.c.l.b16 %v109
    %v181 = vunpack.c.l.b16 %v110
    %v182 = vunpack.c.l.b16 %v111
    %v183 = vunpack.c.l.b16 %v112
    %v184 = vunpack.c.l.b16 %v113
    %v185 = vunpack.c.l.b16 %v114
    %v186 = vunpack.c.l.b16 %v115
    %v187 = vunpack.c.l.b16 %v116
    %v188 = vunpack.c.l.b16 %v117
    %v189 = vunpack.c.l.b16 %v118
    %v190 = vunpack.c.l.b16 %v119
    %v191 = vunpack.c.l.b16 %v120
    %v192 = vunpack.c.l.b16 %v121
    %v193 = vunpack.c.l.b16 %v122
    %v194 = vunpack.c.l.b16 %v123
    %v195 = vunpack.c.l.b16 %v124
    %v196 = vunpack.c.l.b16 %v125
    %v197 = vunpack.c.l.b16 %v126
    %v198 = vunpack.c.l.b16 %v127
    %v199 = vunpack.c.l.b16 %v128
    %v200 = vunpack.c.l.b16 %v129
    %v201 = vunpack.c.l.b16 %v130
    %v202 = vunpack.c.l.b16 %v131
    %v203 = vunpack.c.l.b16 %v132
    %v204 = vunpack.c.l.b16 %v133
    %v205 = vunpack.c.l.b16 %v134
    %v206 = vunpack.c.l.b16 %v135
    %v207 = vunpack.c.l.b16 %v136
    %v208 = vunpack.c.l.b16 %v137
    %v209 = vunpack.c.l.b16 %v138
    %v210 = vpack.c.b16 %v179, %v178
    %v211 = vpack.c.b16 %v181, %v180
    %v212 = vpack.c.b16 %v183, %v182
    %v213 = vpack.c.b16 %v185, %v184
    %v214 = vpack.c.b16 %v187, %v186
    %v215 = vpack.c.b16 %v189, %v188
    %v216 = vpack.c.b16 %v191, %v190
    %v217 = vpack.c.b16 %v193, %v192
    %v218 = vpack.c.b16 %v195, %v194
    %v219 = vpack.c.b16 %v197, %v196
    %v220 = vpack.c.b16 %v199, %v198
    %v221 = vpack.c.b16 %v201, %v200
    %v222 = vpack.c.b16 %v203, %v202
    %v223 = vpack.c.b16 %v205, %v204
    %v224 = vpack.c.b16 %v207, %v206
    %v225 = vpack.c.b16 %v209, %v208
    %242 = vmatprep.subr.bf16.mxu0 0
    %243 = vmatpush1.bf16.msra.mxu0 %v210
    %244 = vmatprep.subr.bf16.mxu0 0
    %245 = vmatpush1.bf16.msra.mxu0 %v211
    %246 = vmatprep.subr.bf16.mxu0 0
    %247 = vmatpush1.bf16.msra.mxu0 %v212
    %248 = vmatprep.subr.bf16.mxu0 0
    %249 = vmatpush1.bf16.msra.mxu0 %v213
    %250 = vmatprep.subr.bf16.mxu0 0
    %251 = vmatpush1.bf16.msra.mxu0 %v214
    %252 = vmatprep.subr.bf16.mxu0 0
    %253 = vmatpush1.bf16.msra.mxu0 %v215
    %254 = vmatprep.subr.bf16.mxu0 0
    %255 = vmatpush1.bf16.msra.mxu0 %v216
    %256 = vmatprep.subr.bf16.mxu0 0
    %257 = vmatpush1.bf16.msra.mxu0 %v217
    %258 = vmatprep.subr.bf16.mxu0 0
    %259 = vmatpush1.bf16.msra.mxu0 %v218
    %260 = vmatprep.subr.bf16.mxu0 0
    %261 = vmatpush1.bf16.msra.mxu0 %v219
    %262 = vmatprep.subr.bf16.mxu0 0
    %263 = vmatpush1.bf16.msra.mxu0 %v220
    %264 = vmatprep.subr.bf16.mxu0 0
    %265 = vmatpush1.bf16.msra.mxu0 %v221
    %266 = vmatprep.subr.bf16.mxu0 0
    %267 = vmatpush1.bf16.msra.mxu0 %v222
    %268 = vmatprep.subr.bf16.mxu0 0
    %269 = vmatpush1.bf16.msra.mxu0 %v223
    %270 = vmatprep.subr.bf16.mxu0 0
    %271 = vmatpush1.bf16.msra.mxu0 %v224
    %272 = vmatprep.subr.bf16.mxu0 0
    %273 = vmatpush1.bf16.msra.mxu0 %v225
    %274 = vmatprep.mubr.bf16.mxu0 %v100
    %275 = vmatmul.mubr.bf16.gmra.mrb[0].mxu0 %v99
    %v276 = vpop.f32.mrb[0].mxu0
    %v277 = vadd.f32 %v144, %v276
    %v278 = vpop.f32.mrb[0].mxu0
    %v279 = vpop.f32.mrb[0].mxu0
    %v280 = vadd.f32 %v144, %v279
    %v281 = vpop.f32.mrb[0].mxu0
    %282 = vmatprep.mubr.bf16.mxu0 %v102
    %283 = vmatmul.mubr.bf16.gmra.mrb[0].mxu0 %v101
    %v284 = vpop.f32.mrb[0].mxu0
    %v285 = vadd.f32 %v144, %v284
    %v286 = vpop.f32.mrb[0].mxu0
    %v287 = vpop.f32.mrb[0].mxu0
    %v288 = vadd.f32 %v144, %v287
    %v289 = vpop.f32.mrb[0].mxu0
    %290 = vmatprep.mubr.bf16.mxu0 %v104
    %291 = vmatmul.mubr.bf16.gmra.mrb[0].mxu0 %v103
    %v292 = vpop.f32.mrb[0].mxu0
    %v293 = vadd.f32 %v144, %v292
    %v294 = vpop.f32.mrb[0].mxu0
    %v295 = vpop.f32.mrb[0].mxu0
    %v296 = vadd.f32 %v144, %v295
    %v297 = vpop.f32.mrb[0].mxu0
    %298 = vmatprep.mubr.bf16.mxu0 %v106
    %299 = vmatmul.mubr.bf16.gmra.mrb[0].mxu0 %v105
    %v300 = vpop.f32.mrb[0].mxu0
    %v301 = vadd.f32 %v144, %v300
    %v302 = vpop.f32.mrb[0].mxu0
    %v303 = vpop.f32.mrb[0].mxu0
    %v304 = vadd.f32 %v144, %v303
    %v305 = vpop.f32.mrb[0].mxu0
    %306 = vdwg.mxu0
    %v307 = vmax.f32 %v277, 0.0
    %v308 = vmax.f32 %v280, 0.0
    %v309 = vmax.f32 %v285, 0.0
    %v310 = vmax.f32 %v288, 0.0
    %v311 = vmax.f32 %v293, 0.0
    %v312 = vmax.f32 %v296, 0.0
    %v313 = vmax.f32 %v301, 0.0
    %v314 = vmax.f32 %v304, 0.0
    %v315 = vpack.c.bf16 %v308, %v307
    %v316 = vpack.c.bf16 %v310, %v309
    %v317 = vpack.c.bf16 %v312, %v311
    %v318 = vpack.c.bf16 %v314, %v313
    %v319 = vld [vmem:[#allocation7] sm:$0xf]
    %v320 = vld [vmem:[#allocation7 + $0x4] sm:$0xf]
    %v321 = vld [vmem:[#allocation7 + $0x8] sm:$0xf]
    %v322 = vld [vmem:[#allocation7 + $0xc] sm:$0xf]
    %v323 = vld [vmem:[#allocation7 + $0x10] sm:$0xf]
    %v324 = vld [vmem:[#allocation7 + $0x14] sm:$0xf]
    %v325 = vld [vmem:[#allocation7 + $0x18] sm:$0xf]
    %v326 = vld [vmem:[#allocation7 + $0x1c] sm:$0xf]
    %v327 = vld [vmem:[#allocation7 + $0x20] sm:$0xf]
    %v328 = vld [vmem:[#allocation7 + $0x24] sm:$0xf]
    %v329 = vld [vmem:[#allocation7 + $0x28] sm:$0xf]
    %v330 = vld [vmem:[#allocation7 + $0x2c] sm:$0xf]
    %v331 = vld [vmem:[#allocation7 + $0x30] sm:$0xf]
    %v332 = vld [vmem:[#allocation7 + $0x34] sm:$0xf]
    %v333 = vld [vmem:[#allocation7 + $0x38] sm:$0xf]
    %v334 = vld [vmem:[#allocation7 + $0x3c] sm:$0xf]
    %v335 = vld [vmem:[%s4] sm:$0x1]
    %v337 = vlaneseq
    %v338 = vshrl.u32 %v337, 7
    %v339 = vsub.s32 0, %v338
    %v340 = vrot.slane %v335, %v339
    %v358 = vunpack.c.l.b16 %v319
    %v359 = vunpack.c.l.b16 %v320
    %v360 = vunpack.c.l.b16 %v321
    %v361 = vunpack.c.l.b16 %v322
    %v362 = vunpack.c.l.b16 %v323
    %v363 = vunpack.c.l.b16 %v324
    %v364 = vunpack.c.l.b16 %v325
    %v365 = vunpack.c.l.b16 %v326
    %v366 = vunpack.c.l.b16 %v327
    %v367 = vunpack.c.l.b16 %v328
    %v368 = vunpack.c.l.b16 %v329
    %v369 = vunpack.c.l.b16 %v330
    %v370 = vunpack.c.l.b16 %v331
    %v371 = vunpack.c.l.b16 %v332
    %v372 = vunpack.c.l.b16 %v333
    %v373 = vunpack.c.l.b16 %v334
    %v374 = vpack.c.b16 %v359, %v358
    %v375 = vpack.c.b16 %v361, %v360
    %v376 = vpack.c.b16 %v363, %v362
    %v377 = vpack.c.b16 %v365, %v364
    %v378 = vpack.c.b16 %v367, %v366
    %v379 = vpack.c.b16 %v369, %v368
    %v380 = vpack.c.b16 %v371, %v370
    %v381 = vpack.c.b16 %v373, %v372
    %390 = vmatprep.subr.bf16.mxu0 0
    %391 = vmatpush1.bf16.msra.mxu0 %v374
    %392 = vmatprep.subr.bf16.mxu0 0
    %393 = vmatpush1.bf16.msra.mxu0 %v375
    %394 = vmatprep.subr.bf16.mxu0 0
    %395 = vmatpush1.bf16.msra.mxu0 %v376
    %396 = vmatprep.subr.bf16.mxu0 0
    %397 = vmatpush1.bf16.msra.mxu0 %v377
    %398 = vmatprep.subr.bf16.mxu0 0
    %399 = vmatpush1.bf16.msra.mxu0 %v378
    %400 = vmatprep.subr.bf16.mxu0 0
    %401 = vmatpush1.bf16.msra.mxu0 %v379
    %402 = vmatprep.subr.bf16.mxu0 0
    %403 = vmatpush1.bf16.msra.mxu0 %v380
    %404 = vmatprep.subr.bf16.mxu0 0
    %405 = vmatpush1.bf16.msra.mxu0 %v381
    %406 = vmatprep.subr.bf16.mxu0 0
    %407 = vmatpush1.bf16.msra.mxu0 0
    %408 = vmatprep.subr.bf16.mxu0 0
    %409 = vmatpush1.bf16.msra.mxu0 0
    %410 = vmatprep.subr.bf16.mxu0 0
    %411 = vmatpush1.bf16.msra.mxu0 0
    %412 = vmatprep.subr.bf16.mxu0 0
    %413 = vmatpush1.bf16.msra.mxu0 0
    %414 = vmatprep.subr.bf16.mxu0 0
    %415 = vmatpush1.bf16.msra.mxu0 0
    %416 = vmatprep.subr.bf16.mxu0 0
    %417 = vmatpush1.bf16.msra.mxu0 0
    %418 = vmatprep.subr.bf16.mxu0 0
    %419 = vmatpush1.bf16.msra.mxu0 0
    %420 = vmatprep.subr.bf16.mxu0 0
    %421 = vmatpush1.bf16.msra.mxu0 0
    %422 = vmatprep.mubr.bf16.mxu0 0
    %423 = vmatmul.mubr.bf16.gmra.mrb[0].mxu0 %v315
    %v424 = vpop.f32.mrb[0].mxu0
    %v425 = vadd.f32 %v340, %v424
    %v426 = vpop.f32.mrb[0].mxu0
    %v427 = vpop.f32.mrb[0].mxu0
    %v428 = vadd.f32 %v340, %v427
    %v429 = vpop.f32.mrb[0].mxu0
    %430 = vmatprep.mubr.bf16.mxu0 0
    %431 = vmatmul.mubr.bf16.gmra.mrb[0].mxu0 %v316
    %v432 = vpop.f32.mrb[0].mxu0
    %v433 = vadd.f32 %v340, %v432
    %v434 = vpop.f32.mrb[0].mxu0
    %v435 = vpop.f32.mrb[0].mxu0
    %v436 = vadd.f32 %v340, %v435
    %v437 = vpop.f32.mrb[0].mxu0
    %438 = vmatprep.mubr.bf16.mxu0 0
    %439 = vmatmul.mubr.bf16.gmra.mrb[0].mxu0 %v317
    %v440 = vpop.f32.mrb[0].mxu0
    %v441 = vadd.f32 %v340, %v440
    %v442 = vpop.f32.mrb[0].mxu0
    %v443 = vpop.f32.mrb[0].mxu0
    %v444 = vadd.f32 %v340, %v443
    %v445 = vpop.f32.mrb[0].mxu0
    %446 = vmatprep.mubr.bf16.mxu0 0
    %447 = vmatmul.mubr.bf16.gmra.mrb[0].mxu0 %v318
    %v448 = vpop.f32.mrb[0].mxu0
    %v449 = vadd.f32 %v340, %v448
    %v450 = vpop.f32.mrb[0].mxu0
    %v451 = vpop.f32.mrb[0].mxu0
    %v452 = vadd.f32 %v340, %v451
    %v453 = vpop.f32.mrb[0].mxu0
    %454 = vdwg.mxu0
    %v455 = vmax.f32 %v425, 0.0
    %v456 = vmax.f32 %v428, 0.0
    %v457 = vmax.f32 %v433, 0.0
    %v458 = vmax.f32 %v436, 0.0
    %v459 = vmax.f32 %v441, 0.0
    %v460 = vmax.f32 %v444, 0.0
    %v461 = vmax.f32 %v449, 0.0
    %v462 = vmax.f32 %v452, 0.0
    %v463 = vpack.c.bf16 %v456, %v455
    %v464 = vpack.c.bf16 %v458, %v457
    %v465 = vpack.c.bf16 %v460, %v459
    %v466 = vpack.c.bf16 %v462, %v461
    %s467 = scalar_lea.vmem [#allocation7], 64
    %v468 = vld [vmem:[%s467] sm:$0xf]
    %v469 = vld [vmem:[%s467 + $0x4] sm:$0xf]
    %v470 = vld [vmem:[%s467 + $0x8] sm:$0xf]
    %v471 = vld [vmem:[%s467 + $0xc] sm:$0xf]
    %v472 = vld [vmem:[%s467 + $0x10] sm:$0xf]
    %v473 = vld [vmem:[%s467 + $0x14] sm:$0xf]
    %v474 = vld [vmem:[%s467 + $0x18] sm:$0xf]
    %v475 = vld [vmem:[%s467 + $0x1c] sm:$0xf]
    %v476 = vld [vmem:[%s467 + $0x20] sm:$0xf]
    %v477 = vld [vmem:[%s467 + $0x24] sm:$0xf]
    %v478 = vld [vmem:[%s467 + $0x28] sm:$0xf]
    %v479 = vld [vmem:[%s467 + $0x2c] sm:$0xf]
    %v480 = vld [vmem:[%s467 + $0x30] sm:$0xf]
    %v481 = vld [vmem:[%s467 + $0x34] sm:$0xf]
    %v482 = vld [vmem:[%s467 + $0x38] sm:$0xf]
    %v483 = vld [vmem:[%s467 + $0x3c] sm:$0xf]
    %s484 = scalar_lea.vmem %s4, 1
    %v485 = vld [vmem:[%s484] sm:$0x1]
    %v487 = vlaneseq
    %v488 = vshrl.u32 %v487, 7
    %v489 = vsub.s32 0, %v488
    %v490 = vrot.slane %v485, %v489
    %v508 = vunpack.c.l.b16 %v468
    %v509 = vunpack.c.l.b16 %v469
    %v510 = vunpack.c.l.b16 %v470
    %v511 = vunpack.c.l.b16 %v471
    %v512 = vunpack.c.l.b16 %v472
    %v513 = vunpack.c.l.b16 %v473
    %v514 = vunpack.c.l.b16 %v474
    %v515 = vunpack.c.l.b16 %v475
    %v516 = vunpack.c.l.b16 %v476
    %v517 = vunpack.c.l.b16 %v477
    %v518 = vunpack.c.l.b16 %v478
    %v519 = vunpack.c.l.b16 %v479
    %v520 = vunpack.c.l.b16 %v480
    %v521 = vunpack.c.l.b16 %v481
    %v522 = vunpack.c.l.b16 %v482
    %v523 = vunpack.c.l.b16 %v483
    %v524 = vpack.c.b16 %v509, %v508
    %v525 = vpack.c.b16 %v511, %v510
    %v526 = vpack.c.b16 %v513, %v512
    %v527 = vpack.c.b16 %v515, %v514
    %v528 = vpack.c.b16 %v517, %v516
    %v529 = vpack.c.b16 %v519, %v518
    %v530 = vpack.c.b16 %v521, %v520
    %v531 = vpack.c.b16 %v523, %v522
    %540 = vmatprep.subr.bf16.mxu0 0
    %541 = vmatpush1.bf16.msra.mxu0 %v524
    %542 = vmatprep.subr.bf16.mxu0 0
    %543 = vmatpush1.bf16.msra.mxu0 %v525
    %544 = vmatprep.subr.bf16.mxu0 0
    %545 = vmatpush1.bf16.msra.mxu0 %v526
    %546 = vmatprep.subr.bf16.mxu0 0
    %547 = vmatpush1.bf16.msra.mxu0 %v527
    %548 = vmatprep.subr.bf16.mxu0 0
    %549 = vmatpush1.bf16.msra.mxu0 %v528
    %550 = vmatprep.subr.bf16.mxu0 0
    %551 = vmatpush1.bf16.msra.mxu0 %v529
    %552 = vmatprep.subr.bf16.mxu0 0
    %553 = vmatpush1.bf16.msra.mxu0 %v530
    %554 = vmatprep.subr.bf16.mxu0 0
    %555 = vmatpush1.bf16.msra.mxu0 %v531
    %556 = vmatprep.subr.bf16.mxu0 0
    %557 = vmatpush1.bf16.msra.mxu0 0
    %558 = vmatprep.subr.bf16.mxu0 0
    %559 = vmatpush1.bf16.msra.mxu0 0
    %560 = vmatprep.subr.bf16.mxu0 0
    %561 = vmatpush1.bf16.msra.mxu0 0
    %562 = vmatprep.subr.bf16.mxu0 0
    %563 = vmatpush1.bf16.msra.mxu0 0
    %564 = vmatprep.subr.bf16.mxu0 0
    %565 = vmatpush1.bf16.msra.mxu0 0
    %566 = vmatprep.subr.bf16.mxu0 0
    %567 = vmatpush1.bf16.msra.mxu0 0
    %568 = vmatprep.subr.bf16.mxu0 0
    %569 = vmatpush1.bf16.msra.mxu0 0
    %570 = vmatprep.subr.bf16.mxu0 0
    %571 = vmatpush1.bf16.msra.mxu0 0
    %572 = vmatprep.mubr.bf16.mxu0 0
    %573 = vmatmul.mubr.bf16.gmra.mrb[0].mxu0 %v463
    %v574 = vpop.f32.mrb[0].mxu0
    %v575 = vadd.f32 %v490, %v574
    %v576 = vpop.f32.mrb[0].mxu0
    %v577 = vpop.f32.mrb[0].mxu0
    %v578 = vadd.f32 %v490, %v577
    %v579 = vpop.f32.mrb[0].mxu0
    %580 = vmatprep.mubr.bf16.mxu0 0
    %581 = vmatmul.mubr.bf16.gmra.mrb[0].mxu0 %v464
    %v582 = vpop.f32.mrb[0].mxu0
    %v583 = vadd.f32 %v490, %v582
    %v584 = vpop.f32.mrb[0].mxu0
    %v585 = vpop.f32.mrb[0].mxu0
    %v586 = vadd.f32 %v490, %v585
    %v587 = vpop.f32.mrb[0].mxu0
    %588 = vmatprep.mubr.bf16.mxu0 0
    %589 = vmatmul.mubr.bf16.gmra.mrb[0].mxu0 %v465
    %v590 = vpop.f32.mrb[0].mxu0
    %v591 = vadd.f32 %v490, %v590
    %v592 = vpop.f32.mrb[0].mxu0
    %v593 = vpop.f32.mrb[0].mxu0
    %v594 = vadd.f32 %v490, %v593
    %v595 = vpop.f32.mrb[0].mxu0
    %596 = vmatprep.mubr.bf16.mxu0 0
    %597 = vmatmul.mubr.bf16.gmra.mrb[0].mxu0 %v466
    %v598 = vpop.f32.mrb[0].mxu0
    %v599 = vadd.f32 %v490, %v598
    %v600 = vpop.f32.mrb[0].mxu0
    %v601 = vpop.f32.mrb[0].mxu0
    %v602 = vadd.f32 %v490, %v601
    %v603 = vpop.f32.mrb[0].mxu0
    %604 = vdwg.mxu0
    %v605 = vmax.f32 %v575, 0.0
    %v606 = vmax.f32 %v578, 0.0
    %v607 = vmax.f32 %v583, 0.0
    %v608 = vmax.f32 %v586, 0.0
    %v609 = vmax.f32 %v591, 0.0
    %v610 = vmax.f32 %v594, 0.0
    %v611 = vmax.f32 %v599, 0.0
    %v612 = vmax.f32 %v602, 0.0
    %v613 = vpack.c.bf16 %v606, %v605
    %v614 = vpack.c.bf16 %v608, %v607
    %v615 = vpack.c.bf16 %v610, %v609
    %v616 = vpack.c.bf16 %v612, %v611
    %s617 = scalar_lea.vmem [#allocation7], 128
    %v618 = vld [vmem:[%s617] sm:$0xf]
    %v619 = vld [vmem:[%s617 + $0x4] sm:$0xf]
    %v620 = vld [vmem:[%s617 + $0x8] sm:$0xf]
    %v621 = vld [vmem:[%s617 + $0xc] sm:$0xf]
    %v622 = vld [vmem:[%s617 + $0x10] sm:$0xf]
    %v623 = vld [vmem:[%s617 + $0x14] sm:$0xf]
    %v624 = vld [vmem:[%s617 + $0x18] sm:$0xf]
    %v625 = vld [vmem:[%s617 + $0x1c] sm:$0xf]
    %v626 = vld [vmem:[%s617 + $0x20] sm:$0xf]
    %v627 = vld [vmem:[%s617 + $0x24] sm:$0xf]
    %v628 = vld [vmem:[%s617 + $0x28] sm:$0xf]
    %v629 = vld [vmem:[%s617 + $0x2c] sm:$0xf]
    %v630 = vld [vmem:[%s617 + $0x30] sm:$0xf]
    %v631 = vld [vmem:[%s617 + $0x34] sm:$0xf]
    %v632 = vld [vmem:[%s617 + $0x38] sm:$0xf]
    %v633 = vld [vmem:[%s617 + $0x3c] sm:$0xf]
    %s634 = scalar_lea.vmem %s4, 2
    %v635 = vld [vmem:[%s634] sm:$0x1]
    %v637 = vlaneseq
    %v638 = vshrl.u32 %v637, 7
    %v639 = vsub.s32 0, %v638
    %v640 = vrot.slane %v635, %v639
    %v658 = vunpack.c.l.b16 %v618
    %v659 = vunpack.c.l.b16 %v619
    %v660 = vunpack.c.l.b16 %v620
    %v661 = vunpack.c.l.b16 %v621
    %v662 = vunpack.c.l.b16 %v622
    %v663 = vunpack.c.l.b16 %v623
    %v664 = vunpack.c.l.b16 %v624
    %v665 = vunpack.c.l.b16 %v625
    %v666 = vunpack.c.l.b16 %v626
    %v667 = vunpack.c.l.b16 %v627
    %v668 = vunpack.c.l.b16 %v628
    %v669 = vunpack.c.l.b16 %v629
    %v670 = vunpack.c.l.b16 %v630
    %v671 = vunpack.c.l.b16 %v631
    %v672 = vunpack.c.l.b16 %v632
    %v673 = vunpack.c.l.b16 %v633
    %v674 = vpack.c.b16 %v659, %v658
    %v675 = vpack.c.b16 %v661, %v660
    %v676 = vpack.c.b16 %v663, %v662
    %v677 = vpack.c.b16 %v665, %v664
    %v678 = vpack.c.b16 %v667, %v666
    %v679 = vpack.c.b16 %v669, %v668
    %v680 = vpack.c.b16 %v671, %v670
    %v681 = vpack.c.b16 %v673, %v672
    %690 = vmatprep.subr.bf16.mxu0 0
    %691 = vmatpush1.bf16.msra.mxu0 %v674
    %692 = vmatprep.subr.bf16.mxu0 0
    %693 = vmatpush1.bf16.msra.mxu0 %v675
    %694 = vmatprep.subr.bf16.mxu0 0
    %695 = vmatpush1.bf16.msra.mxu0 %v676
    %696 = vmatprep.subr.bf16.mxu0 0
    %697 = vmatpush1.bf16.msra.mxu0 %v677
    %698 = vmatprep.subr.bf16.mxu0 0
    %699 = vmatpush1.bf16.msra.mxu0 %v678
    %700 = vmatprep.subr.bf16.mxu0 0
    %701 = vmatpush1.bf16.msra.mxu0 %v679
    %702 = vmatprep.subr.bf16.mxu0 0
    %703 = vmatpush1.bf16.msra.mxu0 %v680
    %704 = vmatprep.subr.bf16.mxu0 0
    %705 = vmatpush1.bf16.msra.mxu0 %v681
    %706 = vmatprep.subr.bf16.mxu0 0
    %707 = vmatpush1.bf16.msra.mxu0 0
    %708 = vmatprep.subr.bf16.mxu0 0
    %709 = vmatpush1.bf16.msra.mxu0 0
    %710 = vmatprep.subr.bf16.mxu0 0
    %711 = vmatpush1.bf16.msra.mxu0 0
    %712 = vmatprep.subr.bf16.mxu0 0
    %713 = vmatpush1.bf16.msra.mxu0 0
    %714 = vmatprep.subr.bf16.mxu0 0
    %715 = vmatpush1.bf16.msra.mxu0 0
    %716 = vmatprep.subr.bf16.mxu0 0
    %717 = vmatpush1.bf16.msra.mxu0 0
    %718 = vmatprep.subr.bf16.mxu0 0
    %719 = vmatpush1.bf16.msra.mxu0 0
    %720 = vmatprep.subr.bf16.mxu0 0
    %721 = vmatpush1.bf16.msra.mxu0 0
    %722 = vmatprep.mubr.bf16.mxu0 0
    %723 = vmatmul.mubr.bf16.gmra.mrb[0].mxu0 %v613
    %v724 = vpop.f32.mrb[0].mxu0
    %v725 = vadd.f32 %v640, %v724
    %v726 = vpop.f32.mrb[0].mxu0
    %v727 = vpop.f32.mrb[0].mxu0
    %v728 = vadd.f32 %v640, %v727
    %v729 = vpop.f32.mrb[0].mxu0
    %730 = vmatprep.mubr.bf16.mxu0 0
    %731 = vmatmul.mubr.bf16.gmra.mrb[0].mxu0 %v614
    %v732 = vpop.f32.mrb[0].mxu0
    %v733 = vadd.f32 %v640, %v732
    %v734 = vpop.f32.mrb[0].mxu0
    %v735 = vpop.f32.mrb[0].mxu0
    %v736 = vadd.f32 %v640, %v735
    %v737 = vpop.f32.mrb[0].mxu0
    %738 = vmatprep.mubr.bf16.mxu0 0
    %739 = vmatmul.mubr.bf16.gmra.mrb[0].mxu0 %v615
    %v740 = vpop.f32.mrb[0].mxu0
    %v741 = vadd.f32 %v640, %v740
    %v742 = vpop.f32.mrb[0].mxu0
    %v743 = vpop.f32.mrb[0].mxu0
    %v744 = vadd.f32 %v640, %v743
    %v745 = vpop.f32.mrb[0].mxu0
    %746 = vmatprep.mubr.bf16.mxu0 0
    %747 = vmatmul.mubr.bf16.gmra.mrb[0].mxu0 %v616
    %v748 = vpop.f32.mrb[0].mxu0
    %v749 = vadd.f32 %v640, %v748
    %v750 = vpop.f32.mrb[0].mxu0
    %v751 = vpop.f32.mrb[0].mxu0
    %v752 = vadd.f32 %v640, %v751
    %v753 = vpop.f32.mrb[0].mxu0
    %754 = vdwg.mxu0
    %v755 = vmax.f32 %v725, 0.0
    %v756 = vmax.f32 %v728, 0.0
    %v757 = vmax.f32 %v733, 0.0
    %v758 = vmax.f32 %v736, 0.0
    %v759 = vmax.f32 %v741, 0.0
    %v760 = vmax.f32 %v744, 0.0
    %v761 = vmax.f32 %v749, 0.0
    %v762 = vmax.f32 %v752, 0.0
    %v763 = vpack.c.bf16 %v756, %v755
    %v764 = vpack.c.bf16 %v758, %v757
    %v765 = vpack.c.bf16 %v760, %v759
    %v766 = vpack.c.bf16 %v762, %v761
    %s767 = scalar_lea.vmem [#allocation7], 192
    %v768 = vld [vmem:[%s767] sm:$0xf]
    %v769 = vld [vmem:[%s767 + $0x4] sm:$0xf]
    %v770 = vld [vmem:[%s767 + $0x8] sm:$0xf]
    %v771 = vld [vmem:[%s767 + $0xc] sm:$0xf]
    %v772 = vld [vmem:[%s767 + $0x10] sm:$0xf]
    %v773 = vld [vmem:[%s767 + $0x14] sm:$0xf]
    %v774 = vld [vmem:[%s767 + $0x18] sm:$0xf]
    %v775 = vld [vmem:[%s767 + $0x1c] sm:$0xf]
    %v776 = vld [vmem:[%s767 + $0x20] sm:$0xf]
    %v777 = vld [vmem:[%s767 + $0x24] sm:$0xf]
    %v778 = vld [vmem:[%s767 + $0x28] sm:$0xf]
    %v779 = vld [vmem:[%s767 + $0x2c] sm:$0xf]
    %v780 = vld [vmem:[%s767 + $0x30] sm:$0xf]
    %v781 = vld [vmem:[%s767 + $0x34] sm:$0xf]
    %v782 = vld [vmem:[%s767 + $0x38] sm:$0xf]
    %v783 = vld [vmem:[%s767 + $0x3c] sm:$0xf]
    %s784 = scalar_lea.vmem %s4, 3
    %v785 = vld [vmem:[%s784] sm:$0x1]
    %v787 = vlaneseq
    %v788 = vshrl.u32 %v787, 7
    %v789 = vsub.s32 0, %v788
    %v790 = vrot.slane %v785, %v789
    %v808 = vunpack.c.l.b16 %v768
    %v809 = vunpack.c.l.b16 %v769
    %v810 = vunpack.c.l.b16 %v770
    %v811 = vunpack.c.l.b16 %v771
    %v812 = vunpack.c.l.b16 %v772
    %v813 = vunpack.c.l.b16 %v773
    %v814 = vunpack.c.l.b16 %v774
    %v815 = vunpack.c.l.b16 %v775
    %v816 = vunpack.c.l.b16 %v776
    %v817 = vunpack.c.l.b16 %v777
    %v818 = vunpack.c.l.b16 %v778
    %v819 = vunpack.c.l.b16 %v779
    %v820 = vunpack.c.l.b16 %v780
    %v821 = vunpack.c.l.b16 %v781
    %v822 = vunpack.c.l.b16 %v782
    %v823 = vunpack.c.l.b16 %v783
    %v824 = vpack.c.b16 %v809, %v808
    %v825 = vpack.c.b16 %v811, %v810
    %v826 = vpack.c.b16 %v813, %v812
    %v827 = vpack.c.b16 %v815, %v814
    %v828 = vpack.c.b16 %v817, %v816
    %v829 = vpack.c.b16 %v819, %v818
    %v830 = vpack.c.b16 %v821, %v820
    %v831 = vpack.c.b16 %v823, %v822
    %840 = vmatprep.subr.bf16.mxu0 0
    %841 = vmatpush1.bf16.msra.mxu0 %v824
    %842 = vmatprep.subr.bf16.mxu0 0
    %843 = vmatpush1.bf16.msra.mxu0 %v825
    %844 = vmatprep.subr.bf16.mxu0 0
    %845 = vmatpush1.bf16.msra.mxu0 %v826
    %846 = vmatprep.subr.bf16.mxu0 0
    %847 = vmatpush1.bf16.msra.mxu0 %v827
    %848 = vmatprep.subr.bf16.mxu0 0
    %849 = vmatpush1.bf16.msra.mxu0 %v828
    %850 = vmatprep.subr.bf16.mxu0 0
    %851 = vmatpush1.bf16.msra.mxu0 %v829
    %852 = vmatprep.subr.bf16.mxu0 0
    %853 = vmatpush1.bf16.msra.mxu0 %v830
    %854 = vmatprep.subr.bf16.mxu0 0
    %855 = vmatpush1.bf16.msra.mxu0 %v831
    %856 = vmatprep.subr.bf16.mxu0 0
    %857 = vmatpush1.bf16.msra.mxu0 0
    %858 = vmatprep.subr.bf16.mxu0 0
    %859 = vmatpush1.bf16.msra.mxu0 0
    %860 = vmatprep.subr.bf16.mxu0 0
    %861 = vmatpush1.bf16.msra.mxu0 0
    %862 = vmatprep.subr.bf16.mxu0 0
    %863 = vmatpush1.bf16.msra.mxu0 0
    %864 = vmatprep.subr.bf16.mxu0 0
    %865 = vmatpush1.bf16.msra.mxu0 0
    %866 = vmatprep.subr.bf16.mxu0 0
    %867 = vmatpush1.bf16.msra.mxu0 0
    %868 = vmatprep.subr.bf16.mxu0 0
    %869 = vmatpush1.bf16.msra.mxu0 0
    %870 = vmatprep.subr.bf16.mxu0 0
    %871 = vmatpush1.bf16.msra.mxu0 0
    %872 = vmatprep.mubr.bf16.mxu0 0
    %873 = vmatmul.mubr.bf16.gmra.mrb[0].mxu0 %v763
    %v874 = vpop.f32.mrb[0].mxu0
    %v875 = vadd.f32 %v790, %v874
    %v876 = vpop.f32.mrb[0].mxu0
    %v877 = vpop.f32.mrb[0].mxu0
    %v878 = vadd.f32 %v790, %v877
    %v879 = vpop.f32.mrb[0].mxu0
    %880 = vmatprep.mubr.bf16.mxu0 0
    %881 = vmatmul.mubr.bf16.gmra.mrb[0].mxu0 %v764
    %v882 = vpop.f32.mrb[0].mxu0
    %v883 = vadd.f32 %v790, %v882
    %v884 = vpop.f32.mrb[0].mxu0
    %v885 = vpop.f32.mrb[0].mxu0
    %v886 = vadd.f32 %v790, %v885
    %v887 = vpop.f32.mrb[0].mxu0
    %888 = vmatprep.mubr.bf16.mxu0 0
    %889 = vmatmul.mubr.bf16.gmra.mrb[0].mxu0 %v765
    %v890 = vpop.f32.mrb[0].mxu0
    %v891 = vadd.f32 %v790, %v890
    %v892 = vpop.f32.mrb[0].mxu0
    %v893 = vpop.f32.mrb[0].mxu0
    %v894 = vadd.f32 %v790, %v893
    %v895 = vpop.f32.mrb[0].mxu0
    %896 = vmatprep.mubr.bf16.mxu0 0
    %897 = vmatmul.mubr.bf16.gmra.mrb[0].mxu0 %v766
    %v898 = vpop.f32.mrb[0].mxu0
    %v899 = vadd.f32 %v790, %v898
    %v900 = vpop.f32.mrb[0].mxu0
    %v901 = vpop.f32.mrb[0].mxu0
    %v902 = vadd.f32 %v790, %v901
    %v903 = vpop.f32.mrb[0].mxu0
    %904 = vdwg.mxu0
    %v905 = vmax.f32 %v875, 0.0
    %v906 = vmax.f32 %v878, 0.0
    %v907 = vmax.f32 %v883, 0.0
    %v908 = vmax.f32 %v886, 0.0
    %v909 = vmax.f32 %v891, 0.0
    %v910 = vmax.f32 %v894, 0.0
    %v911 = vmax.f32 %v899, 0.0
    %v912 = vmax.f32 %v902, 0.0
    %v913 = vpack.c.bf16 %v906, %v905
    %v914 = vpack.c.bf16 %v908, %v907
    %v915 = vpack.c.bf16 %v910, %v909
    %v916 = vpack.c.bf16 %v912, %v911
    %v917 = vld [vmem:[#allocation8] sm:$0xf]
    %v918 = vld [vmem:[#allocation8 + $0x4] sm:$0xf]
    %v919 = vld [vmem:[#allocation8 + $0x8] sm:$0xf]
    %v920 = vld [vmem:[#allocation8 + $0xc] sm:$0xf]
    %v921 = vld [vmem:[#allocation8 + $0x10] sm:$0xf]
    %v922 = vld [vmem:[#allocation8 + $0x14] sm:$0xf]
    %v923 = vld [vmem:[#allocation8 + $0x18] sm:$0xf]
    %v924 = vld [vmem:[#allocation8 + $0x1c] sm:$0xf]
    %v925 = vld [vmem:[#allocation8 + $0x20] sm:$0xf]
    %v926 = vld [vmem:[#allocation8 + $0x24] sm:$0xf]
    %v927 = vld [vmem:[#allocation8 + $0x28] sm:$0xf]
    %v928 = vld [vmem:[#allocation8 + $0x2c] sm:$0xf]
    %v929 = vld [vmem:[#allocation8 + $0x30] sm:$0xf]
    %v930 = vld [vmem:[#allocation8 + $0x34] sm:$0xf]
    %v931 = vld [vmem:[#allocation8 + $0x38] sm:$0xf]
    %v932 = vld [vmem:[#allocation8 + $0x3c] sm:$0xf]
    %v933 = vld [vmem:[%s6] sm:$0x1]
    %v935 = vlaneseq
    %v936 = vshrl.u32 %v935, 7
    %v937 = vsub.s32 0, %v936
    %v938 = vrot.slane %v933, %v937
    %v956 = vunpack.c.l.b16 %v917
    %v957 = vunpack.c.l.b16 %v918
    %v958 = vunpack.c.l.b16 %v919
    %v959 = vunpack.c.l.b16 %v920
    %v960 = vunpack.c.l.b16 %v921
    %v961 = vunpack.c.l.b16 %v922
    %v962 = vunpack.c.l.b16 %v923
    %v963 = vunpack.c.l.b16 %v924
    %v964 = vunpack.c.l.b16 %v925
    %v965 = vunpack.c.l.b16 %v926
    %v966 = vunpack.c.l.b16 %v927
    %v967 = vunpack.c.l.b16 %v928
    %v968 = vunpack.c.l.b16 %v929
    %v969 = vunpack.c.l.b16 %v930
    %v970 = vunpack.c.l.b16 %v931
    %v971 = vunpack.c.l.b16 %v932
    %v972 = vpack.c.b16 %v957, %v956
    %v973 = vpack.c.b16 %v959, %v958
    %v974 = vpack.c.b16 %v961, %v960
    %v975 = vpack.c.b16 %v963, %v962
    %v976 = vpack.c.b16 %v965, %v964
    %v977 = vpack.c.b16 %v967, %v966
    %v978 = vpack.c.b16 %v969, %v968
    %v979 = vpack.c.b16 %v971, %v970
    %988 = vmatprep.subr.bf16.mxu0 0
    %989 = vmatpush1.bf16.msra.mxu0 %v972
    %990 = vmatprep.subr.bf16.mxu0 0
    %991 = vmatpush1.bf16.msra.mxu0 %v973
    %992 = vmatprep.subr.bf16.mxu0 0
    %993 = vmatpush1.bf16.msra.mxu0 %v974
    %994 = vmatprep.subr.bf16.mxu0 0
    %995 = vmatpush1.bf16.msra.mxu0 %v975
    %996 = vmatprep.subr.bf16.mxu0 0
    %997 = vmatpush1.bf16.msra.mxu0 %v976
    %998 = vmatprep.subr.bf16.mxu0 0
    %999 = vmatpush1.bf16.msra.mxu0 %v977
    %1000 = vmatprep.subr.bf16.mxu0 0
    %1001 = vmatpush1.bf16.msra.mxu0 %v978
    %1002 = vmatprep.subr.bf16.mxu0 0
    %1003 = vmatpush1.bf16.msra.mxu0 %v979
    %1004 = vmatprep.subr.bf16.mxu0 0
    %1005 = vmatpush1.bf16.msra.mxu0 0
    %1006 = vmatprep.subr.bf16.mxu0 0
    %1007 = vmatpush1.bf16.msra.mxu0 0
    %1008 = vmatprep.subr.bf16.mxu0 0
    %1009 = vmatpush1.bf16.msra.mxu0 0
    %1010 = vmatprep.subr.bf16.mxu0 0
    %1011 = vmatpush1.bf16.msra.mxu0 0
    %1012 = vmatprep.subr.bf16.mxu0 0
    %1013 = vmatpush1.bf16.msra.mxu0 0
    %1014 = vmatprep.subr.bf16.mxu0 0
    %1015 = vmatpush1.bf16.msra.mxu0 0
    %1016 = vmatprep.subr.bf16.mxu0 0
    %1017 = vmatpush1.bf16.msra.mxu0 0
    %1018 = vmatprep.subr.bf16.mxu0 0
    %1019 = vmatpush1.bf16.msra.mxu0 0
    %1020 = vmatprep.mubr.bf16.mxu0 0
    %1021 = vmatmul.mubr.bf16.gmra.mrb[0].mxu0 %v913
    %v1022 = vpop.f32.mrb[0].mxu0
    %v1023 = vadd.f32 %v938, %v1022
    %v1024 = vpop.f32.mrb[0].mxu0
    %v1025 = vpop.f32.mrb[0].mxu0
    %v1026 = vadd.f32 %v938, %v1025
    %v1027 = vpop.f32.mrb[0].mxu0
    %1028 = vmatprep.mubr.bf16.mxu0 0
    %1029 = vmatmul.mubr.bf16.gmra.mrb[0].mxu0 %v914
    %v1030 = vpop.f32.mrb[0].mxu0
    %v1031 = vadd.f32 %v938, %v1030
    %v1032 = vpop.f32.mrb[0].mxu0
    %v1033 = vpop.f32.mrb[0].mxu0
    %v1034 = vadd.f32 %v938, %v1033
    %v1035 = vpop.f32.mrb[0].mxu0
    %1036 = vmatprep.mubr.bf16.mxu0 0
    %1037 = vmatmul.mubr.bf16.gmra.mrb[0].mxu0 %v915
    %v1038 = vpop.f32.mrb[0].mxu0
    %v1039 = vadd.f32 %v938, %v1038
    %v1040 = vpop.f32.mrb[0].mxu0
    %v1041 = vpop.f32.mrb[0].mxu0
    %v1042 = vadd.f32 %v938, %v1041
    %v1043 = vpop.f32.mrb[0].mxu0
    %1044 = vmatprep.mubr.bf16.mxu0 0
    %1045 = vmatmul.mubr.bf16.gmra.mrb[0].mxu0 %v916
    %v1046 = vpop.f32.mrb[0].mxu0
    %v1047 = vadd.f32 %v938, %v1046
    %v1048 = vpop.f32.mrb[0].mxu0
    %v1049 = vpop.f32.mrb[0].mxu0
    %v1050 = vadd.f32 %v938, %v1049
    %v1051 = vpop.f32.mrb[0].mxu0
    %1052 = vdwg.mxu0
    %v1053 = vpack.c.bf16 %v1026, %v1023
    %v1054 = vpack.c.bf16 %v1034, %v1031
    %v1055 = vpack.c.bf16 %v1042, %v1039
    %v1056 = vpack.c.bf16 %v1050, %v1047
    %v1061 = vunpack.c.l.b16 %v1053
    %v1062 = vunpack.c.h.b16 %v1053
    %v1063 = vunpack.c.l.b16 %v1054
    %v1064 = vunpack.c.h.b16 %v1054
    %v1065 = vunpack.c.l.b16 %v1055
    %v1066 = vunpack.c.h.b16 %v1055
    %v1067 = vunpack.c.l.b16 %v1056
    %v1068 = vunpack.c.h.b16 %v1056
    %v1069 = vpack.c.b16 %v1061, %v1061
    %v1070 = vpack.c.b16 %v1062, %v1062
    %v1071 = vpack.c.b16 %v1063, %v1063
    %v1072 = vpack.c.b16 %v1064, %v1064
    %v1073 = vpack.c.b16 %v1065, %v1065
    %v1074 = vpack.c.b16 %v1066, %v1066
    %v1075 = vpack.c.b16 %v1067, %v1067
    %v1076 = vpack.c.b16 %v1068, %v1068
    %1085 = vst [vmem:[#allocation10] sm:$0xf] %v1069
    %1086 = vst [vmem:[#allocation10 + $0x4] sm:$0xf] %v1070
    %1087 = vst [vmem:[#allocation10 + $0x8] sm:$0xf] %v1071
    %1088 = vst [vmem:[#allocation10 + $0xc] sm:$0xf] %v1072
    %1089 = vst [vmem:[#allocation10 + $0x10] sm:$0xf] %v1073
    %1090 = vst [vmem:[#allocation10 + $0x14] sm:$0xf] %v1074
    %1091 = vst [vmem:[#allocation10 + $0x18] sm:$0xf] %v1075
    %1092 = vst [vmem:[#allocation10 + $0x1c] sm:$0xf] %v1076
    // Predicated region
    $region46: #{tpu_custom_call.1} parent=1 // pred_check
      _
    $region47: #{tpu_custom_call.1} parent=1 // pred_check_branch
      %1094 = sbr.rel (0) target = $region49
    $region48: #{tpu_custom_call.1} parent=1 // pred_region
      %s1096 = ssub.s32 512, 512
      %1097 = vsyncadd [#allocation4], %s1096
      %s1098 = sshll.u32 [#allocation10], 4
      %s1099 = int_to_ptr.vmem [resolvable:$true] %s1098
      %1104 = dma.vmem_to_hbm [thread:$0]  %s1099, 512, %s7, [#allocation4], 64, 64, 4
    $region49: #{tpu_custom_call.1} parent=1 // pred_fallthru
      _
    // Predicated region
    $region50: #{tpu_custom_call.1} parent=1 // pred_check
      _
    $region51: #{tpu_custom_call.1} parent=1 // pred_check_branch
      %1106 = sbr.rel (0) target = $region53
    $region52: #{tpu_custom_call.1} parent=1 // pred_region
      %1107 = dma.done [#allocation4], 512
    $region53: #{tpu_custom_call.1} parent=1 // pred_fallthru
      _
    %1108 = vsyncpa [#allocation3], 1
    %1109 = vsyncpa [#allocation6], 1
    %1110 = vsyncpa [#allocation9], 1
    %1111 = vsyncpa [#allocation4], 1

</llo_original>
